<compile_context>
chip_gen: v6e
topology: v6e:2x2x1
jax: 0.10.0
libtpu: 0.0.40
codegen_flags: <defaults>
</compile_context>

<pallas_src>
import math
import functools

import jax
import jax.numpy as jnp
from jax.experimental import pallas as pl
from jax.experimental.pallas import tpu as pltpu


# ----------------------------- Pallas kernel ------------------------------ #
def _self_attention_kernel(x_ref, wqkv_ref, bqkv_ref, wp_ref, bp_ref, out_ref,
                           *, n_head, n_embd):
    """One grid step: a (Bb, L, 3D) slab of concatenated [key|query|value].

    x_ref    : (Bb, L, 3D)   concatenated [key | query | value] activations
    wqkv_ref : (3D, 3D)      block_diag(Wk.T, Wq.T, Wv.T)  (pre-transposed)
    bqkv_ref : (1, 3D)       [bk | bq | bv]
    wp_ref   : (D, D)        Wp.T                           (pre-transposed)
    bp_ref   : (1, D)
    out_ref  : (Bb, L, D)
    """
    Bb, L, threeD = x_ref.shape
    D = n_embd
    hd = D // n_head
    scale = 1.0 / math.sqrt(hd)
    cdt = x_ref.dtype            # MXU operand dtype (f32, or bf16 on v6e/v7x)

    # --- fused K/Q/V projection: single wide MXU matmul, f32 accumulation ---
    x2 = x_ref[...].reshape(Bb * L, threeD)                # sublane-merge only
    kqv = jnp.dot(x2, wqkv_ref[...],
                  preferred_element_type=jnp.float32) + bqkv_ref[0]
    kqv = kqv.astype(cdt).reshape(Bb, L, threeD)           # columns: [k | q | v]

    wp = wp_ref[...]                                       # (D, D), (in, out)

    # --- per-head attention (static loop over heads, batched over batch) ----
    # Head merge is fused into the output projection:
    #   out = sum_h y_h @ Wp.T[h*hd:(h+1)*hd, :]  + bp
    acc = jnp.zeros((Bb * L, D), jnp.float32)
    for h in range(n_head):
        k_h = kqv[:, :,             h * hd:(h + 1) * hd]            # (Bb, L, hd)
        q_h = kqv[:, :,     D + h * hd:D + (h + 1) * hd]            # (Bb, L, hd)
        v_h = kqv[:, :, 2 * D + h * hd:2 * D + (h + 1) * hd]        # (Bb, L, hd)

        # masked=False in this module config -> no causal mask.
        att = jnp.einsum('bqd,bkd->bqk', q_h, k_h,
                         preferred_element_type=jnp.float32) * scale  # (Bb, L, L)
        att = att - jnp.max(att, axis=-1, keepdims=True)
        att = jnp.exp(att)
        att = att * pl.reciprocal(jnp.sum(att, axis=-1, keepdims=True),
                                  approx=True)                        # EUP slot

        y_h = jnp.einsum('bqk,bkd->bqd', att.astype(cdt), v_h,
                         preferred_element_type=jnp.float32)          # (Bb, L, hd)
        acc = acc + jnp.dot(y_h.astype(cdt).reshape(Bb * L, hd),
                            wp[h * hd:(h + 1) * hd, :],
                            preferred_element_type=jnp.float32)

    out = acc + bp_ref[0]
    # NOTE: last dim is D=32 (<128 lanes) -> masked stores, but writeback is
    # only ~2 KB here; a lane-dense (B, L*D) output would require an in-kernel
    # sublane->lane relayout that costs more than it saves at this size.
    out_ref[...] = out.reshape(Bb, L, D).astype(out_ref.dtype)


# ------------------------------ wrapper ----------------------------------- #
def self_attention_pallas(key, value, query, params, n_head, *,
                          block_b=None, mxu_dtype=None):
    """key/value/query: (B, L, D). params: PyTorch-layout (out, in) weights.

    block_b:   batch rows per grid step (default: whole batch, one step).
               Set block_b = B // 2 on v7x with large B to use both TCs.
    mxu_dtype: optional dtype for matmul operands (e.g. jnp.bfloat16 on
               v6e/v7x); accumulation/softmax stay float32.
    """
    B, L, D = query.shape
    assert D % n_head == 0
    if block_b is None:
        block_b = B                      # collapse the grid: one step
    assert B % block_b == 0
    num_blocks = B // block_b

    f32 = jnp.float32
    cdt = mxu_dtype if mxu_dtype is not None else query.dtype

    # Concatenate the three attention inputs along the feature dim so the
    # kernel can run a single fused projection matmul.
    x = jnp.concatenate([key, query, value], axis=-1).astype(cdt)       # (B, L, 3D)

    # Pre-transpose PyTorch (out, in) weights to (in, out) and fuse K/Q/V into
    # one block-diagonal (3D, 3D) weight; biases concatenated to (1, 3D).
    z = jnp.zeros((D, D), f32)
    w_qkv = jnp.block([[params["wk"].T, z,              z],
                       [z,              params["wq"].T, z],
                       [z,              z,              params["wv"].T]]).astype(cdt)
    b_qkv = jnp.concatenate([params["bk"], params["bq"], params["bv"]],
                            axis=-1).astype(f32)                          # (1, 3D)
    wp_t = params["wp"].T.astype(cdt)                                     # (D, D)
    bp = params["bp"].astype(f32)                                         # (1, D)

    kernel = functools.partial(_self_attention_kernel, n_head=n_head, n_embd=D)

    act_spec  = pl.BlockSpec((block_b, L, 3 * D), lambda i: (i, 0, 0))
    out_spec  = pl.BlockSpec((block_b, L, D),     lambda i: (i, 0, 0))
    # Weights/biases have constant index_maps; with a single grid step there
    # is nothing to double-buffer (for multi-step grids they could be marked
    # pipeline_mode=pl.Buffered(1) to halve weight VMEM on v7x at large D).
    wqkv_spec = pl.BlockSpec((3 * D, 3 * D), lambda i: (0, 0))
    bqkv_spec = pl.BlockSpec((1, 3 * D),     lambda i: (0, 0))
    wp_spec   = pl.BlockSpec((D, D),         lambda i: (0, 0))
    bp_spec   = pl.BlockSpec((1, D),         lambda i: (0, 0))

    return pl.pallas_call(
        kernel,
        out_shape=jax.ShapeDtypeStruct((B, L, D), query.dtype),
        grid_spec=pltpu.PrefetchScalarGridSpec(
            num_scalar_prefetch=0,
            grid=(num_blocks,),
            in_specs=[act_spec, wqkv_spec, bqkv_spec, wp_spec, bp_spec],
            out_specs=out_spec,
        ),
        compiler_params=pltpu.CompilerParams(
            dimension_semantics=("parallel",)),
    )(x, w_qkv, b_qkv, wp_t, bp)


# --------------------------- parameter init -------------------------------- #
def make_params(rng, n_embd, gain=0.01):
    """Orthogonal weights (gain=0.01) + zero biases, matching init_()."""
    keys = jax.random.split(rng, 4)
    ortho = jax.nn.initializers.orthogonal(scale=gain)
    names = ["k", "q", "v", "p"]
    params = {}
    for kk, name in zip(keys, names):
        params[f"w{name}"] = ortho(kk, (n_embd, n_embd), jnp.float32)  # (out, in)
        params[f"b{name}"] = jnp.zeros((1, n_embd), jnp.float32)
    return params


# --------------------------- pure-JAX reference ---------------------------- #
def self_attention_ref(key, value, query, params, n_head):
    B, L, D = query.shape
    hd = D // n_head

    def lin(x, w, b):
        return x @ w.T + b[0]

    k = lin(key, params["wk"], params["bk"]).reshape(B, L, n_head, hd).transpose(0, 2, 1, 3)
    q = lin(query, params["wq"], params["bq"]).reshape(B, L, n_head, hd).transpose(0, 2, 1, 3)
    v = lin(value, params["wv"], params["bv"]).reshape(B, L, n_head, hd).transpose(0, 2, 1, 3)

    att = jnp.einsum("bhqd,bhkd->bhqk", q, k) * (1.0 / math.sqrt(hd))
    att = jax.nn.softmax(att, axis=-1)
    y = jnp.einsum("bhqk,bhkd->bhqd", att, v)
    y = y.transpose(0, 2, 1, 3).reshape(B, L, D)
    return lin(y, params["wp"], params["bp"])


# --------------------------------- main ------------------------------------ #
if __name__ == "__main__":
    # Shapes consistent with the module: n_agent=L=8, n_embd=D=32, n_head=4
    B, L, D, H = 2, 8, 32, 4

    root = jax.random.PRNGKey(0)
    k_in, k_val, k_qry, k_par = jax.random.split(root, 4)

    key_x   = jax.random.normal(k_in,  (B, L, D), jnp.float32)
    value_x = jax.random.normal(k_val, (B, L, D), jnp.float32)
    query_x = jax.random.normal(k_qry, (B, L, D), jnp.float32)

    params = make_params(k_par, D)

    out = self_attention_pallas(key_x, value_x, query_x, params, n_head=H)
    out = jax.block_until_ready(out)

    ref = self_attention_ref(key_x, value_x, query_x, params, n_head=H)
    assert out.shape == (B, L, D)
    # Tolerance slightly looser than 1e-5 because the softmax denominator uses
    # the EUP approximate reciprocal (pl.reciprocal(..., approx=True)).
    assert jnp.allclose(out, ref, atol=1e-4, rtol=1e-3), "mismatch vs reference"

    print("KERNEL_OK")
</pallas_src>

<mosaic_0001>
module attributes {stable_mosaic.version = 11 : i64} {
  func.func @_self_attention_kernel(%arg0: i32, %arg1: memref<2x8x96xf32, #tpu.memory_space<vmem>>, %arg2: memref<96x96xf32, #tpu.memory_space<vmem>>, %arg3: memref<1x96xf32, #tpu.memory_space<vmem>>, %arg4: memref<32x32xf32, #tpu.memory_space<vmem>>, %arg5: memref<1x32xf32, #tpu.memory_space<vmem>>, %arg6: memref<2x8x32xf32, #tpu.memory_space<vmem>>) attributes {dimension_semantics = [#tpu.dimension_semantics<parallel>], iteration_bounds = array<i64: 1>, scalar_prefetch = 0 : i64, scratch_operands = 0 : i64, tpu.core_type = #tpu.core_type<tc>, window_params = [{transform_indices = @transform_0, window_bounds = array<i64: 2, 8, 96>}, {pipeline_mode = #tpu.pipeline_mode<synchronous>, transform_indices = @transform_1, window_bounds = array<i64: 96, 96>}, {pipeline_mode = #tpu.pipeline_mode<synchronous>, transform_indices = @transform_2, window_bounds = array<i64: 1, 96>}, {pipeline_mode = #tpu.pipeline_mode<synchronous>, transform_indices = @transform_3, window_bounds = array<i64: 32, 32>}, {pipeline_mode = #tpu.pipeline_mode<synchronous>, transform_indices = @transform_4, window_bounds = array<i64: 1, 32>}, {transform_indices = @transform_5, window_bounds = array<i64: 2, 8, 32>}]} {
    %c0 = arith.constant 0 : index
    %c0_0 = arith.constant 0 : index
    %c0_1 = arith.constant 0 : index
    %0 = vector.load %arg1[%c0, %c0_0, %c0_1] : memref<2x8x96xf32, #tpu.memory_space<vmem>>, vector<2x8x96xf32>
    %1 = vector.shape_cast %0 : vector<2x8x96xf32> to vector<16x96xf32>
    %c0_2 = arith.constant 0 : index
    %c0_3 = arith.constant 0 : index
    %2 = vector.load %arg2[%c0_2, %c0_3] : memref<96x96xf32, #tpu.memory_space<vmem>>, vector<96x96xf32>
    %cst = arith.constant dense<0.000000e+00> : vector<16x96xf32>
    %3 = tpu.matmul %1, %2, %cst {dimension_numbers = #tpu.dot_dimension_numbers<[1], [0], [0], [1], [0, 0, 1, 1], [], []>} : vector<16x96xf32>, vector<96x96xf32>, vector<16x96xf32> -> vector<16x96xf32>
    %c0_4 = arith.constant 0 : index
    %c0_5 = arith.constant 0 : index
    %4 = vector.load %arg3[%c0_4, %c0_5] : memref<1x96xf32, #tpu.memory_space<vmem>>, vector<1x96xf32>
    %5 = vector.shape_cast %4 : vector<1x96xf32> to vector<96xf32>
    %6 = vector.shape_cast %5 : vector<96xf32> to vector<1x96xf32>
    %7 = vector.broadcast %6 : vector<1x96xf32> to vector<16x96xf32>
    %8 = arith.addf %3, %7 : vector<16x96xf32>
    %9 = vector.shape_cast %8 : vector<16x96xf32> to vector<2x8x96xf32>
    %c0_6 = arith.constant 0 : index
    %c0_7 = arith.constant 0 : index
    %10 = vector.load %arg4[%c0_6, %c0_7] : memref<32x32xf32, #tpu.memory_space<vmem>>, vector<32x32xf32>
    %cst_8 = arith.constant 0.000000e+00 : f32
    %11 = vector.broadcast %cst_8 : f32 to vector<16x32xf32>
    %12 = vector.extract_strided_slice %9 {offsets = [0, 0, 0], sizes = [2, 8, 8], strides = [1, 1, 1]} : vector<2x8x96xf32> to vector<2x8x8xf32>
    %13 = vector.extract_strided_slice %9 {offsets = [0, 0, 32], sizes = [2, 8, 8], strides = [1, 1, 1]} : vector<2x8x96xf32> to vector<2x8x8xf32>
    %14 = vector.extract_strided_slice %9 {offsets = [0, 0, 64], sizes = [2, 8, 8], strides = [1, 1, 1]} : vector<2x8x96xf32> to vector<2x8x8xf32>
    "tpu.trace_start"() <{level = 10 : i32, message = "bqd,bkd->bqk"}> : () -> ()
    %cst_9 = arith.constant dense<0.000000e+00> : vector<2x8x8xf32>
    %15 = tpu.matmul %13, %12, %cst_9 {dimension_numbers = #tpu.dot_dimension_numbers<[2], [2], [1], [1], [0, 0, 0, 1, 1, 1], [0], [0]>} : vector<2x8x8xf32>, vector<2x8x8xf32>, vector<2x8x8xf32> -> vector<2x8x8xf32>
    "tpu.trace_stop"() : () -> ()
    %cst_10 = arith.constant 0.353553385 : f32
    %16 = vector.broadcast %cst_10 : f32 to vector<2x8x8xf32>
    %17 = arith.mulf %15, %16 : vector<2x8x8xf32>
    %cst_11 = arith.constant dense<0xFF800000> : vector<2x8xf32>
    %18 = vector.multi_reduction <maximumf>, %17, %cst_11 [2] : vector<2x8x8xf32> to vector<2x8xf32>
    %19 = vector.shape_cast %18 : vector<2x8xf32> to vector<2x8x1xf32>
    %20 = vector.broadcast %19 : vector<2x8x1xf32> to vector<2x8x8xf32>
    %21 = arith.subf %17, %20 : vector<2x8x8xf32>
    %22 = math.exp %21 : vector<2x8x8xf32>
    %cst_12 = arith.constant dense<0.000000e+00> : vector<2x8xf32>
    %23 = vector.multi_reduction <add>, %22, %cst_12 [2] : vector<2x8x8xf32> to vector<2x8xf32>
    %24 = vector.shape_cast %23 : vector<2x8xf32> to vector<2x8x1xf32>
    %25 = tpu.reciprocal %24 {approx = true} : vector<2x8x1xf32> -> vector<2x8x1xf32>
    %26 = vector.broadcast %25 : vector<2x8x1xf32> to vector<2x8x8xf32>
    %27 = arith.mulf %22, %26 : vector<2x8x8xf32>
    "tpu.trace_start"() <{level = 10 : i32, message = "bqk,bkd->bqd"}> : () -> ()
    %cst_13 = arith.constant dense<0.000000e+00> : vector<2x8x8xf32>
    %28 = tpu.matmul %27, %14, %cst_13 {dimension_numbers = #tpu.dot_dimension_numbers<[2], [1], [1], [2], [0, 0, 0, 1, 1, 2], [0], [0]>} : vector<2x8x8xf32>, vector<2x8x8xf32>, vector<2x8x8xf32> -> vector<2x8x8xf32>
    "tpu.trace_stop"() : () -> ()
    %29 = vector.shape_cast %28 : vector<2x8x8xf32> to vector<16x8xf32>
    %30 = vector.extract_strided_slice %10 {offsets = [0, 0], sizes = [8, 32], strides = [1, 1]} : vector<32x32xf32> to vector<8x32xf32>
    %cst_14 = arith.constant dense<0.000000e+00> : vector<16x32xf32>
    %31 = tpu.matmul %29, %30, %cst_14 {dimension_numbers = #tpu.dot_dimension_numbers<[1], [0], [0], [1], [0, 0, 1, 1], [], []>} : vector<16x8xf32>, vector<8x32xf32>, vector<16x32xf32> -> vector<16x32xf32>
    %32 = arith.addf %11, %31 : vector<16x32xf32>
    %33 = vector.extract_strided_slice %9 {offsets = [0, 0, 8], sizes = [2, 8, 8], strides = [1, 1, 1]} : vector<2x8x96xf32> to vector<2x8x8xf32>
    %34 = vector.extract_strided_slice %9 {offsets = [0, 0, 40], sizes = [2, 8, 8], strides = [1, 1, 1]} : vector<2x8x96xf32> to vector<2x8x8xf32>
    %35 = vector.extract_strided_slice %9 {offsets = [0, 0, 72], sizes = [2, 8, 8], strides = [1, 1, 1]} : vector<2x8x96xf32> to vector<2x8x8xf32>
    "tpu.trace_start"() <{level = 10 : i32, message = "bqd,bkd->bqk"}> : () -> ()
    %cst_15 = arith.constant dense<0.000000e+00> : vector<2x8x8xf32>
    %36 = tpu.matmul %34, %33, %cst_15 {dimension_numbers = #tpu.dot_dimension_numbers<[2], [2], [1], [1], [0, 0, 0, 1, 1, 1], [0], [0]>} : vector<2x8x8xf32>, vector<2x8x8xf32>, vector<2x8x8xf32> -> vector<2x8x8xf32>
    "tpu.trace_stop"() : () -> ()
    %cst_16 = arith.constant 0.353553385 : f32
    %37 = vector.broadcast %cst_16 : f32 to vector<2x8x8xf32>
    %38 = arith.mulf %36, %37 : vector<2x8x8xf32>
    %cst_17 = arith.constant dense<0xFF800000> : vector<2x8xf32>
    %39 = vector.multi_reduction <maximumf>, %38, %cst_17 [2] : vector<2x8x8xf32> to vector<2x8xf32>
    %40 = vector.shape_cast %39 : vector<2x8xf32> to vector<2x8x1xf32>
    %41 = vector.broadcast %40 : vector<2x8x1xf32> to vector<2x8x8xf32>
    %42 = arith.subf %38, %41 : vector<2x8x8xf32>
    %43 = math.exp %42 : vector<2x8x8xf32>
    %cst_18 = arith.constant dense<0.000000e+00> : vector<2x8xf32>
    %44 = vector.multi_reduction <add>, %43, %cst_18 [2] : vector<2x8x8xf32> to vector<2x8xf32>
    %45 = vector.shape_cast %44 : vector<2x8xf32> to vector<2x8x1xf32>
    %46 = tpu.reciprocal %45 {approx = true} : vector<2x8x1xf32> -> vector<2x8x1xf32>
    %47 = vector.broadcast %46 : vector<2x8x1xf32> to vector<2x8x8xf32>
    %48 = arith.mulf %43, %47 : vector<2x8x8xf32>
    "tpu.trace_start"() <{level = 10 : i32, message = "bqk,bkd->bqd"}> : () -> ()
    %cst_19 = arith.constant dense<0.000000e+00> : vector<2x8x8xf32>
    %49 = tpu.matmul %48, %35, %cst_19 {dimension_numbers = #tpu.dot_dimension_numbers<[2], [1], [1], [2], [0, 0, 0, 1, 1, 2], [0], [0]>} : vector<2x8x8xf32>, vector<2x8x8xf32>, vector<2x8x8xf32> -> vector<2x8x8xf32>
    "tpu.trace_stop"() : () -> ()
    %50 = vector.shape_cast %49 : vector<2x8x8xf32> to vector<16x8xf32>
    %51 = vector.extract_strided_slice %10 {offsets = [8, 0], sizes = [8, 32], strides = [1, 1]} : vector<32x32xf32> to vector<8x32xf32>
    %cst_20 = arith.constant dense<0.000000e+00> : vector<16x32xf32>
    %52 = tpu.matmul %50, %51, %cst_20 {dimension_numbers = #tpu.dot_dimension_numbers<[1], [0], [0], [1], [0, 0, 1, 1], [], []>} : vector<16x8xf32>, vector<8x32xf32>, vector<16x32xf32> -> vector<16x32xf32>
    %53 = arith.addf %32, %52 : vector<16x32xf32>
    %54 = vector.extract_strided_slice %9 {offsets = [0, 0, 16], sizes = [2, 8, 8], strides = [1, 1, 1]} : vector<2x8x96xf32> to vector<2x8x8xf32>
    %55 = vector.extract_strided_slice %9 {offsets = [0, 0, 48], sizes = [2, 8, 8], strides = [1, 1, 1]} : vector<2x8x96xf32> to vector<2x8x8xf32>
    %56 = vector.extract_strided_slice %9 {offsets = [0, 0, 80], sizes = [2, 8, 8], strides = [1, 1, 1]} : vector<2x8x96xf32> to vector<2x8x8xf32>
    "tpu.trace_start"() <{level = 10 : i32, message = "bqd,bkd->bqk"}> : () -> ()
    %cst_21 = arith.constant dense<0.000000e+00> : vector<2x8x8xf32>
    %57 = tpu.matmul %55, %54, %cst_21 {dimension_numbers = #tpu.dot_dimension_numbers<[2], [2], [1], [1], [0, 0, 0, 1, 1, 1], [0], [0]>} : vector<2x8x8xf32>, vector<2x8x8xf32>, vector<2x8x8xf32> -> vector<2x8x8xf32>
    "tpu.trace_stop"() : () -> ()
    %cst_22 = arith.constant 0.353553385 : f32
    %58 = vector.broadcast %cst_22 : f32 to vector<2x8x8xf32>
    %59 = arith.mulf %57, %58 : vector<2x8x8xf32>
    %cst_23 = arith.constant dense<0xFF800000> : vector<2x8xf32>
    %60 = vector.multi_reduction <maximumf>, %59, %cst_23 [2] : vector<2x8x8xf32> to vector<2x8xf32>
    %61 = vector.shape_cast %60 : vector<2x8xf32> to vector<2x8x1xf32>
    %62 = vector.broadcast %61 : vector<2x8x1xf32> to vector<2x8x8xf32>
    %63 = arith.subf %59, %62 : vector<2x8x8xf32>
    %64 = math.exp %63 : vector<2x8x8xf32>
    %cst_24 = arith.constant dense<0.000000e+00> : vector<2x8xf32>
    %65 = vector.multi_reduction <add>, %64, %cst_24 [2] : vector<2x8x8xf32> to vector<2x8xf32>
    %66 = vector.shape_cast %65 : vector<2x8xf32> to vector<2x8x1xf32>
    %67 = tpu.reciprocal %66 {approx = true} : vector<2x8x1xf32> -> vector<2x8x1xf32>
    %68 = vector.broadcast %67 : vector<2x8x1xf32> to vector<2x8x8xf32>
    %69 = arith.mulf %64, %68 : vector<2x8x8xf32>
    "tpu.trace_start"() <{level = 10 : i32, message = "bqk,bkd->bqd"}> : () -> ()
    %cst_25 = arith.constant dense<0.000000e+00> : vector<2x8x8xf32>
    %70 = tpu.matmul %69, %56, %cst_25 {dimension_numbers = #tpu.dot_dimension_numbers<[2], [1], [1], [2], [0, 0, 0, 1, 1, 2], [0], [0]>} : vector<2x8x8xf32>, vector<2x8x8xf32>, vector<2x8x8xf32> -> vector<2x8x8xf32>
    "tpu.trace_stop"() : () -> ()
    %71 = vector.shape_cast %70 : vector<2x8x8xf32> to vector<16x8xf32>
    %72 = vector.extract_strided_slice %10 {offsets = [16, 0], sizes = [8, 32], strides = [1, 1]} : vector<32x32xf32> to vector<8x32xf32>
    %cst_26 = arith.constant dense<0.000000e+00> : vector<16x32xf32>
    %73 = tpu.matmul %71, %72, %cst_26 {dimension_numbers = #tpu.dot_dimension_numbers<[1], [0], [0], [1], [0, 0, 1, 1], [], []>} : vector<16x8xf32>, vector<8x32xf32>, vector<16x32xf32> -> vector<16x32xf32>
    %74 = arith.addf %53, %73 : vector<16x32xf32>
    %75 = vector.extract_strided_slice %9 {offsets = [0, 0, 24], sizes = [2, 8, 8], strides = [1, 1, 1]} : vector<2x8x96xf32> to vector<2x8x8xf32>
    %76 = vector.extract_strided_slice %9 {offsets = [0, 0, 56], sizes = [2, 8, 8], strides = [1, 1, 1]} : vector<2x8x96xf32> to vector<2x8x8xf32>
    %77 = vector.extract_strided_slice %9 {offsets = [0, 0, 88], sizes = [2, 8, 8], strides = [1, 1, 1]} : vector<2x8x96xf32> to vector<2x8x8xf32>
    "tpu.trace_start"() <{level = 10 : i32, message = "bqd,bkd->bqk"}> : () -> ()
    %cst_27 = arith.constant dense<0.000000e+00> : vector<2x8x8xf32>
    %78 = tpu.matmul %76, %75, %cst_27 {dimension_numbers = #tpu.dot_dimension_numbers<[2], [2], [1], [1], [0, 0, 0, 1, 1, 1], [0], [0]>} : vector<2x8x8xf32>, vector<2x8x8xf32>, vector<2x8x8xf32> -> vector<2x8x8xf32>
    "tpu.trace_stop"() : () -> ()
    %cst_28 = arith.constant 0.353553385 : f32
    %79 = vector.broadcast %cst_28 : f32 to vector<2x8x8xf32>
    %80 = arith.mulf %78, %79 : vector<2x8x8xf32>
    %cst_29 = arith.constant dense<0xFF800000> : vector<2x8xf32>
    %81 = vector.multi_reduction <maximumf>, %80, %cst_29 [2] : vector<2x8x8xf32> to vector<2x8xf32>
    %82 = vector.shape_cast %81 : vector<2x8xf32> to vector<2x8x1xf32>
    %83 = vector.broadcast %82 : vector<2x8x1xf32> to vector<2x8x8xf32>
    %84 = arith.subf %80, %83 : vector<2x8x8xf32>
    %85 = math.exp %84 : vector<2x8x8xf32>
    %cst_30 = arith.constant dense<0.000000e+00> : vector<2x8xf32>
    %86 = vector.multi_reduction <add>, %85, %cst_30 [2] : vector<2x8x8xf32> to vector<2x8xf32>
    %87 = vector.shape_cast %86 : vector<2x8xf32> to vector<2x8x1xf32>
    %88 = tpu.reciprocal %87 {approx = true} : vector<2x8x1xf32> -> vector<2x8x1xf32>
    %89 = vector.broadcast %88 : vector<2x8x1xf32> to vector<2x8x8xf32>
    %90 = arith.mulf %85, %89 : vector<2x8x8xf32>
    "tpu.trace_start"() <{level = 10 : i32, message = "bqk,bkd->bqd"}> : () -> ()
    %cst_31 = arith.constant dense<0.000000e+00> : vector<2x8x8xf32>
    %91 = tpu.matmul %90, %77, %cst_31 {dimension_numbers = #tpu.dot_dimension_numbers<[2], [1], [1], [2], [0, 0, 0, 1, 1, 2], [0], [0]>} : vector<2x8x8xf32>, vector<2x8x8xf32>, vector<2x8x8xf32> -> vector<2x8x8xf32>
    "tpu.trace_stop"() : () -> ()
    %92 = vector.shape_cast %91 : vector<2x8x8xf32> to vector<16x8xf32>
    %93 = vector.extract_strided_slice %10 {offsets = [24, 0], sizes = [8, 32], strides = [1, 1]} : vector<32x32xf32> to vector<8x32xf32>
    %cst_32 = arith.constant dense<0.000000e+00> : vector<16x32xf32>
    %94 = tpu.matmul %92, %93, %cst_32 {dimension_numbers = #tpu.dot_dimension_numbers<[1], [0], [0], [1], [0, 0, 1, 1], [], []>} : vector<16x8xf32>, vector<8x32xf32>, vector<16x32xf32> -> vector<16x32xf32>
    %95 = arith.addf %74, %94 : vector<16x32xf32>
    %c0_33 = arith.constant 0 : index
    %c0_34 = arith.constant 0 : index
    %96 = vector.load %arg5[%c0_33, %c0_34] : memref<1x32xf32, #tpu.memory_space<vmem>>, vector<1x32xf32>
    %97 = vector.shape_cast %96 : vector<1x32xf32> to vector<32xf32>
    %98 = vector.shape_cast %97 : vector<32xf32> to vector<1x32xf32>
    %99 = vector.broadcast %98 : vector<1x32xf32> to vector<16x32xf32>
    %100 = arith.addf %95, %99 : vector<16x32xf32>
    %101 = vector.shape_cast %100 : vector<16x32xf32> to vector<2x8x32xf32>
    %c0_35 = arith.constant 0 : index
    %c0_36 = arith.constant 0 : index
    %c0_37 = arith.constant 0 : index
    %102 = vector.load %arg6[%c0_35, %c0_36, %c0_37] : memref<2x8x32xf32, #tpu.memory_space<vmem>>, vector<2x8x32xf32>
    tpu.vector_store %arg6[%c0_35, %c0_36, %c0_37], %101 {strides = array<i32>} : memref<2x8x32xf32, #tpu.memory_space<vmem>>, vector<2x8x32xf32>,
    return
  }
  func.func @transform_0(%arg0: i32) -> (i32, i32, i32) {
    %c0_i32 = arith.constant 0 : i32
    %c0_i32_0 = arith.constant 0 : i32
    %c0_i32_1 = arith.constant 0 : i32
    return %arg0, %c0_i32, %c0_i32_0 : i32, i32, i32
  }
  func.func @transform_1(%arg0: i32) -> (i32, i32) {
    %c0_i32 = arith.constant 0 : i32
    %c0_i32_0 = arith.constant 0 : i32
    %c0_i32_1 = arith.constant 0 : i32
    return %c0_i32, %c0_i32_0 : i32, i32
  }
  func.func @transform_2(%arg0: i32) -> (i32, i32) {
    %c0_i32 = arith.constant 0 : i32
    %c0_i32_0 = arith.constant 0 : i32
    %c0_i32_1 = arith.constant 0 : i32
    return %c0_i32, %c0_i32_0 : i32, i32
  }
  func.func @transform_3(%arg0: i32) -> (i32, i32) {
    %c0_i32 = arith.constant 0 : i32
    %c0_i32_0 = arith.constant 0 : i32
    %c0_i32_1 = arith.constant 0 : i32
    return %c0_i32, %c0_i32_0 : i32, i32
  }
  func.func @transform_4(%arg0: i32) -> (i32, i32) {
    %c0_i32 = arith.constant 0 : i32
    %c0_i32_0 = arith.constant 0 : i32
    %c0_i32_1 = arith.constant 0 : i32
    return %c0_i32, %c0_i32_0 : i32, i32
  }
  func.func @transform_5(%arg0: i32) -> (i32, i32, i32) {
    %c0_i32 = arith.constant 0 : i32
    %c0_i32_0 = arith.constant 0 : i32
    %c0_i32_1 = arith.constant 0 : i32
    return %arg0, %c0_i32, %c0_i32_0 : i32, i32, i32
  }
}

</mosaic_0001>

<llo_original>
// kernel: tpu_custom_call.1
$region0: #{tpu_custom_call.1}
  #allocation0 [shape = 'u32[]', space=smem, size = 0x4, offset = 0x4, fixed_abs, tag = 'smem constant byte address 0x4 - core index']
  #allocation1 [shape = 'u32[144,128]{1,0:T(1,128)}', space=vmem, size = 0x12000, scoped, tag = 'internal scratch']
  %s0 = inlined_call_operand.hbm [shape: f32[2,8,96], index: 0, kind: input, shape index: {}]
  %s1 = inlined_call_operand.hbm [shape: f32[96,96], index: 1, kind: input, shape index: {}]
  %s2 = inlined_call_operand.vmem [shape: f32[1,96], index: 2, kind: input, shape index: {}]
  %s3 = inlined_call_operand.hbm [shape: f32[32,32], index: 3, kind: input, shape index: {}]
  %s4 = inlined_call_operand.vmem [shape: f32[1,32], index: 4, kind: input, shape index: {}]
  %s5 = inlined_call_operand.hbm [shape: f32[2,8,32], index: 5, kind: output, shape index: {}]
  %s6 = sld [smem:[#allocation0]]
  $region42: #{tpu_custom_call.1} parent=0
    _
  %s8 = ssub.s32 1, %s6
  %s9 = scalar_select 0, %s8, %s6
  $region1: #{tpu_custom_call.1} parent=0
    #allocation2 [shape = 'u8[8192]{0}', space=vmem, size = 0x2000, scoped, tag = 'input window, operand 0, single buffered']
    #allocation3 [shape = 's32[1]{0}', space=sflag, size = 0x4, scoped, tag = 'scoped memory for tpu_custom_call.1']
    #allocation4 [shape = 's32[1]{0}', space=sflag, size = 0x4, scoped, tag = 'scoped memory for tpu_custom_call.1']
    #allocation5 [shape = 'u8[49152]{0}', space=vmem, size = 0xc000, scoped, tag = 'input window, operand 1, single buffered']
    #allocation6 [shape = 's32[1]{0}', space=sflag, size = 0x4, scoped, tag = 'scoped memory for tpu_custom_call.1']
    #allocation7 [shape = 'u8[16384]{0}', space=vmem, size = 0x4000, scoped, tag = 'input window, operand 3, single buffered']
    #allocation8 [shape = 'u8[8192]{0}', space=vmem, size = 0x2000, scoped, tag = 'output window, operand 0, single buffered']
    %10 = vsyncpa [#allocation3], 0
    %11 = vsyncpa [#allocation6], 0
    %12 = vsyncpa [#allocation4], 0
    // Predicated region
    $region2: #{tpu_custom_call.1} parent=1 // pred_check
      _
    $region3: #{tpu_custom_call.1} parent=1 // pred_check_branch
      %14 = sbr.rel (0) target = $region5
    $region4: #{tpu_custom_call.1} parent=1 // pred_region
      %s16 = ssub.s32 256, 256
      %17 = vsyncadd [#allocation3], %s16
      %s18 = sshll.u32 [#allocation2], 4
      %s19 = int_to_ptr.vmem [resolvable:$true] %s18
      %24 = dma.hbm_to_vmem [thread:$0]  %s0, 256, %s19, [#allocation3], 128, 128, 8
    $region5: #{tpu_custom_call.1} parent=1 // pred_fallthru
      _
    // Predicated region
    $region6: #{tpu_custom_call.1} parent=1 // pred_check
      _
    $region7: #{tpu_custom_call.1} parent=1 // pred_check_branch
      %26 = sbr.rel (0) target = $region9
    $region8: #{tpu_custom_call.1} parent=1 // pred_region
      %s28 = ssub.s32 1536, 1536
      %29 = vsyncadd [#allocation6], %s28
      %s30 = sshll.u32 [#allocation5], 4
      %s31 = int_to_ptr.vmem [resolvable:$true] %s30
      %36 = dma.hbm_to_vmem [thread:$0]  %s1, 1536, %s31, [#allocation6], 128, 128, 8
    $region9: #{tpu_custom_call.1} parent=1 // pred_fallthru
      _
    // Predicated region
    $region10: #{tpu_custom_call.1} parent=1 // pred_check
      _
    $region11: #{tpu_custom_call.1} parent=1 // pred_check_branch
      %38 = sbr.rel (0) target = $region13
    $region12: #{tpu_custom_call.1} parent=1 // pred_region
      _
    $region13: #{tpu_custom_call.1} parent=1 // pred_fallthru
      _
    // Predicated region
    $region14: #{tpu_custom_call.1} parent=1 // pred_check
      _
    $region15: #{tpu_custom_call.1} parent=1 // pred_check_branch
      %40 = sbr.rel (0) target = $region17
    $region16: #{tpu_custom_call.1} parent=1 // pred_region
      %s42 = ssub.s32 512, 512
      %43 = vsyncadd [#allocation6], %s42
      %s44 = sshll.u32 [#allocation7], 4
      %s45 = int_to_ptr.vmem [resolvable:$true] %s44
      %50 = dma.hbm_to_vmem [thread:$0]  %s3, 512, %s45, [#allocation6], 128, 128, 8
    $region17: #{tpu_custom_call.1} parent=1 // pred_fallthru
      _
    // Predicated region
    $region18: #{tpu_custom_call.1} parent=1 // pred_check
      _
    $region19: #{tpu_custom_call.1} parent=1 // pred_check_branch
      %52 = sbr.rel (0) target = $region21
    $region20: #{tpu_custom_call.1} parent=1 // pred_region
      _
    $region21: #{tpu_custom_call.1} parent=1 // pred_fallthru
      _
    // Predicated region
    $region22: #{tpu_custom_call.1} parent=1 // pred_check
      _
    $region23: #{tpu_custom_call.1} parent=1 // pred_check_branch
      %54 = sbr.rel (0) target = $region25
    $region24: #{tpu_custom_call.1} parent=1 // pred_region
      %55 = dma.done [#allocation3], 256
    $region25: #{tpu_custom_call.1} parent=1 // pred_fallthru
      _
    // Predicated region
    $region26: #{tpu_custom_call.1} parent=1 // pred_check
      _
    $region27: #{tpu_custom_call.1} parent=1 // pred_check_branch
      %57 = sbr.rel (0) target = $region29
    $region28: #{tpu_custom_call.1} parent=1 // pred_region
      %58 = dma.done [#allocation6], 1536
    $region29: #{tpu_custom_call.1} parent=1 // pred_fallthru
      _
    // Predicated region
    $region30: #{tpu_custom_call.1} parent=1 // pred_check
      _
    $region31: #{tpu_custom_call.1} parent=1 // pred_check_branch
      %60 = sbr.rel (0) target = $region33
    $region32: #{tpu_custom_call.1} parent=1 // pred_region
      %61 = dma.done [#allocation6], 512
    $region33: #{tpu_custom_call.1} parent=1 // pred_fallthru
      _
    %v62 = vld [vmem:[#allocation2] sm:$0xff]
    %v63 = vld [vmem:[#allocation2 + $0x8] sm:$0xff]
    %v64 = vld [vmem:[#allocation5] sm:$0xff]
    %v65 = vld [vmem:[#allocation5 + $0x8] sm:$0xff]
    %v66 = vld [vmem:[#allocation5 + $0x10] sm:$0xff]
    %v67 = vld [vmem:[#allocation5 + $0x18] sm:$0xff]
    %v68 = vld [vmem:[#allocation5 + $0x20] sm:$0xff]
    %v69 = vld [vmem:[#allocation5 + $0x28] sm:$0xff]
    %v70 = vld [vmem:[#allocation5 + $0x30] sm:$0xff]
    %v71 = vld [vmem:[#allocation5 + $0x38] sm:$0xff]
    %v72 = vld [vmem:[#allocation5 + $0x40] sm:$0xff]
    %v73 = vld [vmem:[#allocation5 + $0x48] sm:$0xff]
    %v74 = vld [vmem:[#allocation5 + $0x50] sm:$0xff]
    %v75 = vld [vmem:[#allocation5 + $0x58] sm:$0xff]
    %v76 = vld [vmem:[%s2] sm:$0x1]
    %v78 = vlaneseq
    %v79 = vshrl.u32 %v78, 7
    %v80 = vsub.s32 0, %v79
    %v81 = vrot.slane %v76, %v80
    %vm83 = vcmask 785408
    %v85 = vsel %vm83, %v62, 0
    %v88 = vsel %vm83, %v63, 0
    %90 = vmatprep.subr.mxu0 0.0
    %91 = vmatpush1.msra.mxu0 0.0
    %92 = vmatprep.subr.mxu0 0.0
    %93 = vmatpush1.msra.mxu0 0.0
    %94 = vmatprep.subr.mxu0 0.0
    %95 = vmatpush1.msra.mxu0 0.0
    %96 = vmatprep.subr.mxu0 0.0
    %97 = vmatpush1.msra.mxu0 0.0
    %98 = vmatprep.subr.mxu0 0.0
    %99 = vmatpush1.msra.mxu0 %v75
    %100 = vmatprep.subr.mxu0 0.0
    %101 = vmatpush1.msra.mxu0 %v74
    %102 = vmatprep.subr.mxu0 0.0
    %103 = vmatpush1.msra.mxu0 %v73
    %104 = vmatprep.subr.mxu0 0.0
    %105 = vmatpush1.msra.mxu0 %v72
    %106 = vmatprep.subr.mxu0 0.0
    %107 = vmatpush1.msra.mxu0 %v71
    %108 = vmatprep.subr.mxu0 0.0
    %109 = vmatpush1.msra.mxu0 %v70
    %110 = vmatprep.subr.mxu0 0.0
    %111 = vmatpush1.msra.mxu0 %v69
    %112 = vmatprep.subr.mxu0 0.0
    %113 = vmatpush1.msra.mxu0 %v68
    %114 = vmatprep.subr.mxu0 0.0
    %115 = vmatpush1.msra.mxu0 %v67
    %116 = vmatprep.subr.mxu0 0.0
    %117 = vmatpush1.msra.mxu0 %v66
    %118 = vmatprep.subr.mxu0 0.0
    %119 = vmatpush1.msra.mxu0 %v65
    %120 = vmatprep.subr.mxu0 0.0
    %121 = vmatpush1.msra.mxu0 %v64
    %122 = vmatprep.subr.mxu0 0.0
    %123 = vmatpush2.msra.mxu0 0.0
    %124 = vmatprep.subr.mxu0 0.0
    %125 = vmatpush2.msra.mxu0 0.0
    %126 = vmatprep.subr.mxu0 0.0
    %127 = vmatpush2.msra.mxu0 0.0
    %128 = vmatprep.subr.mxu0 0.0
    %129 = vmatpush2.msra.mxu0 0.0
    %130 = vmatprep.subr.mxu0 0.0
    %131 = vmatpush2.msra.mxu0 0.0
    %132 = vmatprep.subr.mxu0 0.0
    %133 = vmatpush2.msra.mxu0 0.0
    %134 = vmatprep.subr.mxu0 0.0
    %135 = vmatpush2.msra.mxu0 0.0
    %136 = vmatprep.subr.mxu0 0.0
    %137 = vmatpush2.msra.mxu0 0.0
    %138 = vmatprep.subr.mxu0 0.0
    %139 = vmatpush2.msra.mxu0 0.0
    %140 = vmatprep.subr.mxu0 0.0
    %141 = vmatpush2.msra.mxu0 0.0
    %142 = vmatprep.subr.mxu0 0.0
    %143 = vmatpush2.msra.mxu0 0.0
    %144 = vmatprep.subr.mxu0 0.0
    %145 = vmatpush2.msra.mxu0 0.0
    %146 = vmatprep.subr.mxu0 0.0
    %147 = vmatpush2.msra.mxu0 0.0
    %148 = vmatprep.subr.mxu0 0.0
    %149 = vmatpush2.msra.mxu0 0.0
    %150 = vmatprep.subr.mxu0 0.0
    %151 = vmatpush2.msra.mxu0 0.0
    %152 = vmatprep.subr.mxu0 0.0
    %153 = vmatpush2.msra.mxu0 0.0
    %154 = vmatprep.mubr.f32.mxu0 0.0
    %155 = vmatmul.mubr.f32.gmra.mxu0 %v85
    %v156 = vpop.f32.mrf.mxu0
    %v157 = vadd.f32 %v81, %v156
    %v158 = vpop.f32.mrf.mxu0
    %159 = vmatprep.mubr.f32.mxu0 0.0
    %160 = vmatmul.mubr.f32.gmra.mxu0 %v88
    %v161 = vpop.f32.mrf.mxu0
    %v162 = vadd.f32 %v81, %v161
    %v163 = vpop.f32.mrf.mxu0
    %164 = vdwg.mxu0
    %v165 = vld [vmem:[#allocation7] sm:$0xff]
    %v166 = vld [vmem:[#allocation7 + $0x8] sm:$0xff]
    %v167 = vld [vmem:[#allocation7 + $0x10] sm:$0xff]
    %v168 = vld [vmem:[#allocation7 + $0x18] sm:$0xff]
    %170 = vrot.lane.b32.xlu0 %v157, 96
    %v171 = vpop.permute.xlu0 %170
    %vm172 = vcmask 64512
    %v173 = vsel %vm172, %v171, 0
    %v175 = vsel %vm172, %v157, 0
    %177 = vmatprep.subr.mxu0 0.0
    %178 = vmatpush1.xpose.msra.mxu0 0.0
    %179 = vmatprep.subr.mxu0 0.0
    %180 = vmatpush1.xpose.msra.mxu0 0.0
    %181 = vmatprep.subr.mxu0 0.0
    %182 = vmatpush1.xpose.msra.mxu0 0.0
    %183 = vmatprep.subr.mxu0 0.0
    %184 = vmatpush1.xpose.msra.mxu0 0.0
    %185 = vmatprep.subr.mxu0 0.0
    %186 = vmatpush1.xpose.msra.mxu0 0.0
    %187 = vmatprep.subr.mxu0 0.0
    %188 = vmatpush1.xpose.msra.mxu0 0.0
    %189 = vmatprep.subr.mxu0 0.0
    %190 = vmatpush1.xpose.msra.mxu0 0.0
    %191 = vmatprep.subr.mxu0 0.0
    %192 = vmatpush1.xpose.msra.mxu0 0.0
    %193 = vmatprep.subr.mxu0 0.0
    %194 = vmatpush1.xpose.msra.mxu0 0.0
    %195 = vmatprep.subr.mxu0 0.0
    %196 = vmatpush1.xpose.msra.mxu0 0.0
    %197 = vmatprep.subr.mxu0 0.0
    %198 = vmatpush1.xpose.msra.mxu0 0.0
    %199 = vmatprep.subr.mxu0 0.0
    %200 = vmatpush1.xpose.msra.mxu0 0.0
    %201 = vmatprep.subr.mxu0 0.0
    %202 = vmatpush1.xpose.msra.mxu0 0.0
    %203 = vmatprep.subr.mxu0 0.0
    %204 = vmatpush1.xpose.msra.mxu0 0.0
    %205 = vmatprep.subr.mxu0 0.0
    %206 = vmatpush1.xpose.msra.mxu0 0.0
    %207 = vmatprep.subr.mxu0 0.0
    %208 = vmatpush1.xpose.msra.mxu0 %v175
    %209 = vmatprep.subr.mxu0 0.0
    %210 = vmatpush2.xpose.msra.mxu0 0.0
    %211 = vmatprep.subr.mxu0 0.0
    %212 = vmatpush2.xpose.msra.mxu0 0.0
    %213 = vmatprep.subr.mxu0 0.0
    %214 = vmatpush2.xpose.msra.mxu0 0.0
    %215 = vmatprep.subr.mxu0 0.0
    %216 = vmatpush2.xpose.msra.mxu0 0.0
    %217 = vmatprep.subr.mxu0 0.0
    %218 = vmatpush2.xpose.msra.mxu0 0.0
    %219 = vmatprep.subr.mxu0 0.0
    %220 = vmatpush2.xpose.msra.mxu0 0.0
    %221 = vmatprep.subr.mxu0 0.0
    %222 = vmatpush2.xpose.msra.mxu0 0.0
    %223 = vmatprep.subr.mxu0 0.0
    %224 = vmatpush2.xpose.msra.mxu0 0.0
    %225 = vmatprep.subr.mxu0 0.0
    %226 = vmatpush2.xpose.msra.mxu0 0.0
    %227 = vmatprep.subr.mxu0 0.0
    %228 = vmatpush2.xpose.msra.mxu0 0.0
    %229 = vmatprep.subr.mxu0 0.0
    %230 = vmatpush2.xpose.msra.mxu0 0.0
    %231 = vmatprep.subr.mxu0 0.0
    %232 = vmatpush2.xpose.msra.mxu0 0.0
    %233 = vmatprep.subr.mxu0 0.0
    %234 = vmatpush2.xpose.msra.mxu0 0.0
    %235 = vmatprep.subr.mxu0 0.0
    %236 = vmatpush2.xpose.msra.mxu0 0.0
    %237 = vmatprep.subr.mxu0 0.0
    %238 = vmatpush2.xpose.msra.mxu0 0.0
    %239 = vmatprep.subr.mxu0 0.0
    %240 = vmatpush2.xpose.msra.mxu0 0.0
    %241 = vmatprep.mubr.f32.mxu0 0.0
    %242 = vmatmul.mubr.f32.gmra.mxu0 %v173
    %v243 = vpop.f32.mrf.mxu0
    %v244 = vadd.f32 0.0, %v243
    %v245 = vpop.f32.mrf.mxu0
    %246 = vdwg.mxu0
    %248 = vrot.lane.b32.xlu0 %v162, 96
    %v249 = vpop.permute.xlu0 %248
    %v250 = vsel %vm172, %v249, 0
    %v252 = vsel %vm172, %v162, 0
    %254 = vmatprep.subr.mxu0 0.0
    %255 = vmatpush1.xpose.msra.mxu0 0.0
    %256 = vmatprep.subr.mxu0 0.0
    %257 = vmatpush1.xpose.msra.mxu0 0.0
    %258 = vmatprep.subr.mxu0 0.0
    %259 = vmatpush1.xpose.msra.mxu0 0.0
    %260 = vmatprep.subr.mxu0 0.0
    %261 = vmatpush1.xpose.msra.mxu0 0.0
    %262 = vmatprep.subr.mxu0 0.0
    %263 = vmatpush1.xpose.msra.mxu0 0.0
    %264 = vmatprep.subr.mxu0 0.0
    %265 = vmatpush1.xpose.msra.mxu0 0.0
    %266 = vmatprep.subr.mxu0 0.0
    %267 = vmatpush1.xpose.msra.mxu0 0.0
    %268 = vmatprep.subr.mxu0 0.0
    %269 = vmatpush1.xpose.msra.mxu0 0.0
    %270 = vmatprep.subr.mxu0 0.0
    %271 = vmatpush1.xpose.msra.mxu0 0.0
    %272 = vmatprep.subr.mxu0 0.0
    %273 = vmatpush1.xpose.msra.mxu0 0.0
    %274 = vmatprep.subr.mxu0 0.0
    %275 = vmatpush1.xpose.msra.mxu0 0.0
    %276 = vmatprep.subr.mxu0 0.0
    %277 = vmatpush1.xpose.msra.mxu0 0.0
    %278 = vmatprep.subr.mxu0 0.0
    %279 = vmatpush1.xpose.msra.mxu0 0.0
    %280 = vmatprep.subr.mxu0 0.0
    %281 = vmatpush1.xpose.msra.mxu0 0.0
    %282 = vmatprep.subr.mxu0 0.0
    %283 = vmatpush1.xpose.msra.mxu0 0.0
    %284 = vmatprep.subr.mxu0 0.0
    %285 = vmatpush1.xpose.msra.mxu0 %v252
    %286 = vmatprep.subr.mxu0 0.0
    %287 = vmatpush2.xpose.msra.mxu0 0.0
    %288 = vmatprep.subr.mxu0 0.0
    %289 = vmatpush2.xpose.msra.mxu0 0.0
    %290 = vmatprep.subr.mxu0 0.0
    %291 = vmatpush2.xpose.msra.mxu0 0.0
    %292 = vmatprep.subr.mxu0 0.0
    %293 = vmatpush2.xpose.msra.mxu0 0.0
    %294 = vmatprep.subr.mxu0 0.0
    %295 = vmatpush2.xpose.msra.mxu0 0.0
    %296 = vmatprep.subr.mxu0 0.0
    %297 = vmatpush2.xpose.msra.mxu0 0.0
    %298 = vmatprep.subr.mxu0 0.0
    %299 = vmatpush2.xpose.msra.mxu0 0.0
    %300 = vmatprep.subr.mxu0 0.0
    %301 = vmatpush2.xpose.msra.mxu0 0.0
    %302 = vmatprep.subr.mxu0 0.0
    %303 = vmatpush2.xpose.msra.mxu0 0.0
    %304 = vmatprep.subr.mxu0 0.0
    %305 = vmatpush2.xpose.msra.mxu0 0.0
    %306 = vmatprep.subr.mxu0 0.0
    %307 = vmatpush2.xpose.msra.mxu0 0.0
    %308 = vmatprep.subr.mxu0 0.0
    %309 = vmatpush2.xpose.msra.mxu0 0.0
    %310 = vmatprep.subr.mxu0 0.0
    %311 = vmatpush2.xpose.msra.mxu0 0.0
    %312 = vmatprep.subr.mxu0 0.0
    %313 = vmatpush2.xpose.msra.mxu0 0.0
    %314 = vmatprep.subr.mxu0 0.0
    %315 = vmatpush2.xpose.msra.mxu0 0.0
    %316 = vmatprep.subr.mxu0 0.0
    %317 = vmatpush2.xpose.msra.mxu0 0.0
    %318 = vmatprep.mubr.f32.mxu0 0.0
    %319 = vmatmul.mubr.f32.gmra.mxu0 %v250
    %v320 = vpop.f32.mrf.mxu0
    %v321 = vadd.f32 0.0, %v320
    %v322 = vpop.f32.mrf.mxu0
    %323 = vdwg.mxu0
    %v324 = vmul.f32 %v244, 0.35355338
    %v325 = vmul.f32 %v321, 0.35355338
    %v326 = vsel %vm172, %v324, -inf
    %327 = vmax.xlane.f32.xlu0 %v326
    %v328 = vpop.xlane.xlu0 %327
    %v329 = vsel %vm172, %v325, -inf
    %330 = vmax.xlane.f32.xlu0 %v329
    %v331 = vpop.xlane.xlu0 %330
    %v332 = vsub.f32 %v324, %v328
    %v333 = vsub.f32 %v325, %v331
    %v334 = vmul.f32 %v332, 1.442695
    %v335 = vpow.pop %v334
    %v336 = vmul.f32 %v333, 1.442695
    %v337 = vpow.pop %v336
    %v338 = vsel %vm172, %v335, 0.0
    %339 = vadd.xlane.f32.xlu0 %v338
    %v340 = vpop.xlane.xlu0 %339
    %v341 = vsel %vm172, %v337, 0.0
    %342 = vadd.xlane.f32.xlu0 %v341
    %v343 = vpop.xlane.xlu0 %342
    %v344 = vrcp.pop %v340
    %v345 = vrcp.pop %v343
    %v346 = vmul.f32 %v335, %v344
    %v347 = vmul.f32 %v337, %v345
    %348 = vrot.lane.b32.xlu0 %v157, 64
    %v349 = vpop.permute.xlu0 %348
    %v352 = vsel %vm172, %v346, 0
    %354 = vmatprep.subr.mxu0 0.0
    %355 = vmatpush1.msra.mxu0 0.0
    %356 = vmatprep.subr.mxu0 0.0
    %357 = vmatpush1.msra.mxu0 0.0
    %358 = vmatprep.subr.mxu0 0.0
    %359 = vmatpush1.msra.mxu0 0.0
    %360 = vmatprep.subr.mxu0 0.0
    %361 = vmatpush1.msra.mxu0 0.0
    %362 = vmatprep.subr.mxu0 0.0
    %363 = vmatpush1.msra.mxu0 0.0
    %364 = vmatprep.subr.mxu0 0.0
    %365 = vmatpush1.msra.mxu0 0.0
    %366 = vmatprep.subr.mxu0 0.0
    %367 = vmatpush1.msra.mxu0 0.0
    %368 = vmatprep.subr.mxu0 0.0
    %369 = vmatpush1.msra.mxu0 0.0
    %370 = vmatprep.subr.mxu0 0.0
    %371 = vmatpush1.msra.mxu0 0.0
    %372 = vmatprep.subr.mxu0 0.0
    %373 = vmatpush1.msra.mxu0 0.0
    %374 = vmatprep.subr.mxu0 0.0
    %375 = vmatpush1.msra.mxu0 0.0
    %376 = vmatprep.subr.mxu0 0.0
    %377 = vmatpush1.msra.mxu0 0.0
    %378 = vmatprep.subr.mxu0 0.0
    %379 = vmatpush1.msra.mxu0 0.0
    %380 = vmatprep.subr.mxu0 0.0
    %381 = vmatpush1.msra.mxu0 0.0
    %382 = vmatprep.subr.mxu0 0.0
    %383 = vmatpush1.msra.mxu0 0.0
    %384 = vmatprep.subr.mxu0 0.0
    %385 = vmatpush1.msra.mxu0 %v349
    %386 = vmatprep.subr.mxu0 0.0
    %387 = vmatpush2.msra.mxu0 0.0
    %388 = vmatprep.subr.mxu0 0.0
    %389 = vmatpush2.msra.mxu0 0.0
    %390 = vmatprep.subr.mxu0 0.0
    %391 = vmatpush2.msra.mxu0 0.0
    %392 = vmatprep.subr.mxu0 0.0
    %393 = vmatpush2.msra.mxu0 0.0
    %394 = vmatprep.subr.mxu0 0.0
    %395 = vmatpush2.msra.mxu0 0.0
    %396 = vmatprep.subr.mxu0 0.0
    %397 = vmatpush2.msra.mxu0 0.0
    %398 = vmatprep.subr.mxu0 0.0
    %399 = vmatpush2.msra.mxu0 0.0
    %400 = vmatprep.subr.mxu0 0.0
    %401 = vmatpush2.msra.mxu0 0.0
    %402 = vmatprep.subr.mxu0 0.0
    %403 = vmatpush2.msra.mxu0 0.0
    %404 = vmatprep.subr.mxu0 0.0
    %405 = vmatpush2.msra.mxu0 0.0
    %406 = vmatprep.subr.mxu0 0.0
    %407 = vmatpush2.msra.mxu0 0.0
    %408 = vmatprep.subr.mxu0 0.0
    %409 = vmatpush2.msra.mxu0 0.0
    %410 = vmatprep.subr.mxu0 0.0
    %411 = vmatpush2.msra.mxu0 0.0
    %412 = vmatprep.subr.mxu0 0.0
    %413 = vmatpush2.msra.mxu0 0.0
    %414 = vmatprep.subr.mxu0 0.0
    %415 = vmatpush2.msra.mxu0 0.0
    %416 = vmatprep.subr.mxu0 0.0
    %417 = vmatpush2.msra.mxu0 0.0
    %418 = vmatprep.mubr.f32.mxu0 0.0
    %419 = vmatmul.mubr.f32.gmra.mxu0 %v352
    %v420 = vpop.f32.mrf.mxu0
    %v421 = vadd.f32 0.0, %v420
    %v422 = vpop.f32.mrf.mxu0
    %423 = vdwg.mxu0
    %424 = vrot.lane.b32.xlu0 %v162, 64
    %v425 = vpop.permute.xlu0 %424
    %v428 = vsel %vm172, %v347, 0
    %430 = vmatprep.subr.mxu0 0.0
    %431 = vmatpush1.msra.mxu0 0.0
    %432 = vmatprep.subr.mxu0 0.0
    %433 = vmatpush1.msra.mxu0 0.0
    %434 = vmatprep.subr.mxu0 0.0
    %435 = vmatpush1.msra.mxu0 0.0
    %436 = vmatprep.subr.mxu0 0.0
    %437 = vmatpush1.msra.mxu0 0.0
    %438 = vmatprep.subr.mxu0 0.0
    %439 = vmatpush1.msra.mxu0 0.0
    %440 = vmatprep.subr.mxu0 0.0
    %441 = vmatpush1.msra.mxu0 0.0
    %442 = vmatprep.subr.mxu0 0.0
    %443 = vmatpush1.msra.mxu0 0.0
    %444 = vmatprep.subr.mxu0 0.0
    %445 = vmatpush1.msra.mxu0 0.0
    %446 = vmatprep.subr.mxu0 0.0
    %447 = vmatpush1.msra.mxu0 0.0
    %448 = vmatprep.subr.mxu0 0.0
    %449 = vmatpush1.msra.mxu0 0.0
    %450 = vmatprep.subr.mxu0 0.0
    %451 = vmatpush1.msra.mxu0 0.0
    %452 = vmatprep.subr.mxu0 0.0
    %453 = vmatpush1.msra.mxu0 0.0
    %454 = vmatprep.subr.mxu0 0.0
    %455 = vmatpush1.msra.mxu0 0.0
    %456 = vmatprep.subr.mxu0 0.0
    %457 = vmatpush1.msra.mxu0 0.0
    %458 = vmatprep.subr.mxu0 0.0
    %459 = vmatpush1.msra.mxu0 0.0
    %460 = vmatprep.subr.mxu0 0.0
    %461 = vmatpush1.msra.mxu0 %v425
    %462 = vmatprep.subr.mxu0 0.0
    %463 = vmatpush2.msra.mxu0 0.0
    %464 = vmatprep.subr.mxu0 0.0
    %465 = vmatpush2.msra.mxu0 0.0
    %466 = vmatprep.subr.mxu0 0.0
    %467 = vmatpush2.msra.mxu0 0.0
    %468 = vmatprep.subr.mxu0 0.0
    %469 = vmatpush2.msra.mxu0 0.0
    %470 = vmatprep.subr.mxu0 0.0
    %471 = vmatpush2.msra.mxu0 0.0
    %472 = vmatprep.subr.mxu0 0.0
    %473 = vmatpush2.msra.mxu0 0.0
    %474 = vmatprep.subr.mxu0 0.0
    %475 = vmatpush2.msra.mxu0 0.0
    %476 = vmatprep.subr.mxu0 0.0
    %477 = vmatpush2.msra.mxu0 0.0
    %478 = vmatprep.subr.mxu0 0.0
    %479 = vmatpush2.msra.mxu0 0.0
    %480 = vmatprep.subr.mxu0 0.0
    %481 = vmatpush2.msra.mxu0 0.0
    %482 = vmatprep.subr.mxu0 0.0
    %483 = vmatpush2.msra.mxu0 0.0
    %484 = vmatprep.subr.mxu0 0.0
    %485 = vmatpush2.msra.mxu0 0.0
    %486 = vmatprep.subr.mxu0 0.0
    %487 = vmatpush2.msra.mxu0 0.0
    %488 = vmatprep.subr.mxu0 0.0
    %489 = vmatpush2.msra.mxu0 0.0
    %490 = vmatprep.subr.mxu0 0.0
    %491 = vmatpush2.msra.mxu0 0.0
    %492 = vmatprep.subr.mxu0 0.0
    %493 = vmatpush2.msra.mxu0 0.0
    %494 = vmatprep.mubr.f32.mxu0 0.0
    %495 = vmatmul.mubr.f32.gmra.mxu0 %v428
    %v496 = vpop.f32.mrf.mxu0
    %v497 = vadd.f32 0.0, %v496
    %v498 = vpop.f32.mrf.mxu0
    %499 = vdwg.mxu0
    %500 = vrot.lane.b32.xlu0 %v157, 88
    %v501 = vpop.permute.xlu0 %500
    %502 = vrot.lane.b32.xlu0 %v157, 120
    %v503 = vpop.permute.xlu0 %502
    %v504 = vsel %vm172, %v501, 0
    %v506 = vsel %vm172, %v503, 0
    %508 = vmatprep.subr.mxu0 0.0
    %509 = vmatpush1.xpose.msra.mxu0 0.0
    %510 = vmatprep.subr.mxu0 0.0
    %511 = vmatpush1.xpose.msra.mxu0 0.0
    %512 = vmatprep.subr.mxu0 0.0
    %513 = vmatpush1.xpose.msra.mxu0 0.0
    %514 = vmatprep.subr.mxu0 0.0
    %515 = vmatpush1.xpose.msra.mxu0 0.0
    %516 = vmatprep.subr.mxu0 0.0
    %517 = vmatpush1.xpose.msra.mxu0 0.0
    %518 = vmatprep.subr.mxu0 0.0
    %519 = vmatpush1.xpose.msra.mxu0 0.0
    %520 = vmatprep.subr.mxu0 0.0
    %521 = vmatpush1.xpose.msra.mxu0 0.0
    %522 = vmatprep.subr.mxu0 0.0
    %523 = vmatpush1.xpose.msra.mxu0 0.0
    %524 = vmatprep.subr.mxu0 0.0
    %525 = vmatpush1.xpose.msra.mxu0 0.0
    %526 = vmatprep.subr.mxu0 0.0
    %527 = vmatpush1.xpose.msra.mxu0 0.0
    %528 = vmatprep.subr.mxu0 0.0
    %529 = vmatpush1.xpose.msra.mxu0 0.0
    %530 = vmatprep.subr.mxu0 0.0
    %531 = vmatpush1.xpose.msra.mxu0 0.0
    %532 = vmatprep.subr.mxu0 0.0
    %533 = vmatpush1.xpose.msra.mxu0 0.0
    %534 = vmatprep.subr.mxu0 0.0
    %535 = vmatpush1.xpose.msra.mxu0 0.0
    %536 = vmatprep.subr.mxu0 0.0
    %537 = vmatpush1.xpose.msra.mxu0 0.0
    %538 = vmatprep.subr.mxu0 0.0
    %539 = vmatpush1.xpose.msra.mxu0 %v506
    %540 = vmatprep.subr.mxu0 0.0
    %541 = vmatpush2.xpose.msra.mxu0 0.0
    %542 = vmatprep.subr.mxu0 0.0
    %543 = vmatpush2.xpose.msra.mxu0 0.0
    %544 = vmatprep.subr.mxu0 0.0
    %545 = vmatpush2.xpose.msra.mxu0 0.0
    %546 = vmatprep.subr.mxu0 0.0
    %547 = vmatpush2.xpose.msra.mxu0 0.0
    %548 = vmatprep.subr.mxu0 0.0
    %549 = vmatpush2.xpose.msra.mxu0 0.0
    %550 = vmatprep.subr.mxu0 0.0
    %551 = vmatpush2.xpose.msra.mxu0 0.0
    %552 = vmatprep.subr.mxu0 0.0
    %553 = vmatpush2.xpose.msra.mxu0 0.0
    %554 = vmatprep.subr.mxu0 0.0
    %555 = vmatpush2.xpose.msra.mxu0 0.0
    %556 = vmatprep.subr.mxu0 0.0
    %557 = vmatpush2.xpose.msra.mxu0 0.0
    %558 = vmatprep.subr.mxu0 0.0
    %559 = vmatpush2.xpose.msra.mxu0 0.0
    %560 = vmatprep.subr.mxu0 0.0
    %561 = vmatpush2.xpose.msra.mxu0 0.0
    %562 = vmatprep.subr.mxu0 0.0
    %563 = vmatpush2.xpose.msra.mxu0 0.0
    %564 = vmatprep.subr.mxu0 0.0
    %565 = vmatpush2.xpose.msra.mxu0 0.0
    %566 = vmatprep.subr.mxu0 0.0
    %567 = vmatpush2.xpose.msra.mxu0 0.0
    %568 = vmatprep.subr.mxu0 0.0
    %569 = vmatpush2.xpose.msra.mxu0 0.0
    %570 = vmatprep.subr.mxu0 0.0
    %571 = vmatpush2.xpose.msra.mxu0 0.0
    %572 = vmatprep.mubr.f32.mxu0 0.0
    %573 = vmatmul.mubr.f32.gmra.mxu0 %v504
    %v574 = vpop.f32.mrf.mxu0
    %v575 = vadd.f32 0.0, %v574
    %v576 = vpop.f32.mrf.mxu0
    %577 = vdwg.mxu0
    %578 = vrot.lane.b32.xlu0 %v162, 88
    %v579 = vpop.permute.xlu0 %578
    %580 = vrot.lane.b32.xlu0 %v162, 120
    %v581 = vpop.permute.xlu0 %580
    %v582 = vsel %vm172, %v579, 0
    %v584 = vsel %vm172, %v581, 0
    %586 = vmatprep.subr.mxu0 0.0
    %587 = vmatpush1.xpose.msra.mxu0 0.0
    %588 = vmatprep.subr.mxu0 0.0
    %589 = vmatpush1.xpose.msra.mxu0 0.0
    %590 = vmatprep.subr.mxu0 0.0
    %591 = vmatpush1.xpose.msra.mxu0 0.0
    %592 = vmatprep.subr.mxu0 0.0
    %593 = vmatpush1.xpose.msra.mxu0 0.0
    %594 = vmatprep.subr.mxu0 0.0
    %595 = vmatpush1.xpose.msra.mxu0 0.0
    %596 = vmatprep.subr.mxu0 0.0
    %597 = vmatpush1.xpose.msra.mxu0 0.0
    %598 = vmatprep.subr.mxu0 0.0
    %599 = vmatpush1.xpose.msra.mxu0 0.0
    %600 = vmatprep.subr.mxu0 0.0
    %601 = vmatpush1.xpose.msra.mxu0 0.0
    %602 = vmatprep.subr.mxu0 0.0
    %603 = vmatpush1.xpose.msra.mxu0 0.0
    %604 = vmatprep.subr.mxu0 0.0
    %605 = vmatpush1.xpose.msra.mxu0 0.0
    %606 = vmatprep.subr.mxu0 0.0
    %607 = vmatpush1.xpose.msra.mxu0 0.0
    %608 = vmatprep.subr.mxu0 0.0
    %609 = vmatpush1.xpose.msra.mxu0 0.0
    %610 = vmatprep.subr.mxu0 0.0
    %611 = vmatpush1.xpose.msra.mxu0 0.0
    %612 = vmatprep.subr.mxu0 0.0
    %613 = vmatpush1.xpose.msra.mxu0 0.0
    %614 = vmatprep.subr.mxu0 0.0
    %615 = vmatpush1.xpose.msra.mxu0 0.0
    %616 = vmatprep.subr.mxu0 0.0
    %617 = vmatpush1.xpose.msra.mxu0 %v584
    %618 = vmatprep.subr.mxu0 0.0
    %619 = vmatpush2.xpose.msra.mxu0 0.0
    %620 = vmatprep.subr.mxu0 0.0
    %621 = vmatpush2.xpose.msra.mxu0 0.0
    %622 = vmatprep.subr.mxu0 0.0
    %623 = vmatpush2.xpose.msra.mxu0 0.0
    %624 = vmatprep.subr.mxu0 0.0
    %625 = vmatpush2.xpose.msra.mxu0 0.0
    %626 = vmatprep.subr.mxu0 0.0
    %627 = vmatpush2.xpose.msra.mxu0 0.0
    %628 = vmatprep.subr.mxu0 0.0
    %629 = vmatpush2.xpose.msra.mxu0 0.0
    %630 = vmatprep.subr.mxu0 0.0
    %631 = vmatpush2.xpose.msra.mxu0 0.0
    %632 = vmatprep.subr.mxu0 0.0
    %633 = vmatpush2.xpose.msra.mxu0 0.0
    %634 = vmatprep.subr.mxu0 0.0
    %635 = vmatpush2.xpose.msra.mxu0 0.0
    %636 = vmatprep.subr.mxu0 0.0
    %637 = vmatpush2.xpose.msra.mxu0 0.0
    %638 = vmatprep.subr.mxu0 0.0
    %639 = vmatpush2.xpose.msra.mxu0 0.0
    %640 = vmatprep.subr.mxu0 0.0
    %641 = vmatpush2.xpose.msra.mxu0 0.0
    %642 = vmatprep.subr.mxu0 0.0
    %643 = vmatpush2.xpose.msra.mxu0 0.0
    %644 = vmatprep.subr.mxu0 0.0
    %645 = vmatpush2.xpose.msra.mxu0 0.0
    %646 = vmatprep.subr.mxu0 0.0
    %647 = vmatpush2.xpose.msra.mxu0 0.0
    %648 = vmatprep.subr.mxu0 0.0
    %649 = vmatpush2.xpose.msra.mxu0 0.0
    %650 = vmatprep.mubr.f32.mxu0 0.0
    %651 = vmatmul.mubr.f32.gmra.mxu0 %v582
    %v652 = vpop.f32.mrf.mxu0
    %v653 = vadd.f32 0.0, %v652
    %v654 = vpop.f32.mrf.mxu0
    %655 = vdwg.mxu0
    %v656 = vmul.f32 %v575, 0.35355338
    %v657 = vmul.f32 %v653, 0.35355338
    %v658 = vsel %vm172, %v656, -inf
    %659 = vmax.xlane.f32.xlu0 %v658
    %v660 = vpop.xlane.xlu0 %659
    %v661 = vsel %vm172, %v657, -inf
    %662 = vmax.xlane.f32.xlu0 %v661
    %v663 = vpop.xlane.xlu0 %662
    %v664 = vsub.f32 %v656, %v660
    %v665 = vsub.f32 %v657, %v663
    %v666 = vmul.f32 %v664, 1.442695
    %v667 = vpow.pop %v666
    %v668 = vmul.f32 %v665, 1.442695
    %v669 = vpow.pop %v668
    %v670 = vsel %vm172, %v667, 0.0
    %671 = vadd.xlane.f32.xlu0 %v670
    %v672 = vpop.xlane.xlu0 %671
    %v673 = vsel %vm172, %v669, 0.0
    %674 = vadd.xlane.f32.xlu0 %v673
    %v675 = vpop.xlane.xlu0 %674
    %v676 = vrcp.pop %v672
    %v677 = vrcp.pop %v675
    %v678 = vmul.f32 %v667, %v676
    %v679 = vmul.f32 %v669, %v677
    %680 = vrot.lane.b32.xlu0 %v157, 56
    %v681 = vpop.permute.xlu0 %680
    %v684 = vsel %vm172, %v678, 0
    %686 = vmatprep.subr.mxu0 0.0
    %687 = vmatpush1.msra.mxu0 0.0
    %688 = vmatprep.subr.mxu0 0.0
    %689 = vmatpush1.msra.mxu0 0.0
    %690 = vmatprep.subr.mxu0 0.0
    %691 = vmatpush1.msra.mxu0 0.0
    %692 = vmatprep.subr.mxu0 0.0
    %693 = vmatpush1.msra.mxu0 0.0
    %694 = vmatprep.subr.mxu0 0.0
    %695 = vmatpush1.msra.mxu0 0.0
    %696 = vmatprep.subr.mxu0 0.0
    %697 = vmatpush1.msra.mxu0 0.0
    %698 = vmatprep.subr.mxu0 0.0
    %699 = vmatpush1.msra.mxu0 0.0
    %700 = vmatprep.subr.mxu0 0.0
    %701 = vmatpush1.msra.mxu0 0.0
    %702 = vmatprep.subr.mxu0 0.0
    %703 = vmatpush1.msra.mxu0 0.0
    %704 = vmatprep.subr.mxu0 0.0
    %705 = vmatpush1.msra.mxu0 0.0
    %706 = vmatprep.subr.mxu0 0.0
    %707 = vmatpush1.msra.mxu0 0.0
    %708 = vmatprep.subr.mxu0 0.0
    %709 = vmatpush1.msra.mxu0 0.0
    %710 = vmatprep.subr.mxu0 0.0
    %711 = vmatpush1.msra.mxu0 0.0
    %712 = vmatprep.subr.mxu0 0.0
    %713 = vmatpush1.msra.mxu0 0.0
    %714 = vmatprep.subr.mxu0 0.0
    %715 = vmatpush1.msra.mxu0 0.0
    %716 = vmatprep.subr.mxu0 0.0
    %717 = vmatpush1.msra.mxu0 %v681
    %718 = vmatprep.subr.mxu0 0.0
    %719 = vmatpush2.msra.mxu0 0.0
    %720 = vmatprep.subr.mxu0 0.0
    %721 = vmatpush2.msra.mxu0 0.0
    %722 = vmatprep.subr.mxu0 0.0
    %723 = vmatpush2.msra.mxu0 0.0
    %724 = vmatprep.subr.mxu0 0.0
    %725 = vmatpush2.msra.mxu0 0.0
    %726 = vmatprep.subr.mxu0 0.0
    %727 = vmatpush2.msra.mxu0 0.0
    %728 = vmatprep.subr.mxu0 0.0
    %729 = vmatpush2.msra.mxu0 0.0
    %730 = vmatprep.subr.mxu0 0.0
    %731 = vmatpush2.msra.mxu0 0.0
    %732 = vmatprep.subr.mxu0 0.0
    %733 = vmatpush2.msra.mxu0 0.0
    %734 = vmatprep.subr.mxu0 0.0
    %735 = vmatpush2.msra.mxu0 0.0
    %736 = vmatprep.subr.mxu0 0.0
    %737 = vmatpush2.msra.mxu0 0.0
    %738 = vmatprep.subr.mxu0 0.0
    %739 = vmatpush2.msra.mxu0 0.0
    %740 = vmatprep.subr.mxu0 0.0
    %741 = vmatpush2.msra.mxu0 0.0
    %742 = vmatprep.subr.mxu0 0.0
    %743 = vmatpush2.msra.mxu0 0.0
    %744 = vmatprep.subr.mxu0 0.0
    %745 = vmatpush2.msra.mxu0 0.0
    %746 = vmatprep.subr.mxu0 0.0
    %747 = vmatpush2.msra.mxu0 0.0
    %748 = vmatprep.subr.mxu0 0.0
    %749 = vmatpush2.msra.mxu0 0.0
    %750 = vmatprep.mubr.f32.mxu0 0.0
    %751 = vmatmul.mubr.f32.gmra.mxu0 %v684
    %v752 = vpop.f32.mrf.mxu0
    %v753 = vadd.f32 0.0, %v752
    %v754 = vpop.f32.mrf.mxu0
    %755 = vdwg.mxu0
    %756 = vrot.lane.b32.xlu0 %v162, 56
    %v757 = vpop.permute.xlu0 %756
    %v760 = vsel %vm172, %v679, 0
    %762 = vmatprep.subr.mxu0 0.0
    %763 = vmatpush1.msra.mxu0 0.0
    %764 = vmatprep.subr.mxu0 0.0
    %765 = vmatpush1.msra.mxu0 0.0
    %766 = vmatprep.subr.mxu0 0.0
    %767 = vmatpush1.msra.mxu0 0.0
    %768 = vmatprep.subr.mxu0 0.0
    %769 = vmatpush1.msra.mxu0 0.0
    %770 = vmatprep.subr.mxu0 0.0
    %771 = vmatpush1.msra.mxu0 0.0
    %772 = vmatprep.subr.mxu0 0.0
    %773 = vmatpush1.msra.mxu0 0.0
    %774 = vmatprep.subr.mxu0 0.0
    %775 = vmatpush1.msra.mxu0 0.0
    %776 = vmatprep.subr.mxu0 0.0
    %777 = vmatpush1.msra.mxu0 0.0
    %778 = vmatprep.subr.mxu0 0.0
    %779 = vmatpush1.msra.mxu0 0.0
    %780 = vmatprep.subr.mxu0 0.0
    %781 = vmatpush1.msra.mxu0 0.0
    %782 = vmatprep.subr.mxu0 0.0
    %783 = vmatpush1.msra.mxu0 0.0
    %784 = vmatprep.subr.mxu0 0.0
    %785 = vmatpush1.msra.mxu0 0.0
    %786 = vmatprep.subr.mxu0 0.0
    %787 = vmatpush1.msra.mxu0 0.0
    %788 = vmatprep.subr.mxu0 0.0
    %789 = vmatpush1.msra.mxu0 0.0
    %790 = vmatprep.subr.mxu0 0.0
    %791 = vmatpush1.msra.mxu0 0.0
    %792 = vmatprep.subr.mxu0 0.0
    %793 = vmatpush1.msra.mxu0 %v757
    %794 = vmatprep.subr.mxu0 0.0
    %795 = vmatpush2.msra.mxu0 0.0
    %796 = vmatprep.subr.mxu0 0.0
    %797 = vmatpush2.msra.mxu0 0.0
    %798 = vmatprep.subr.mxu0 0.0
    %799 = vmatpush2.msra.mxu0 0.0
    %800 = vmatprep.subr.mxu0 0.0
    %801 = vmatpush2.msra.mxu0 0.0
    %802 = vmatprep.subr.mxu0 0.0
    %803 = vmatpush2.msra.mxu0 0.0
    %804 = vmatprep.subr.mxu0 0.0
    %805 = vmatpush2.msra.mxu0 0.0
    %806 = vmatprep.subr.mxu0 0.0
    %807 = vmatpush2.msra.mxu0 0.0
    %808 = vmatprep.subr.mxu0 0.0
    %809 = vmatpush2.msra.mxu0 0.0
    %810 = vmatprep.subr.mxu0 0.0
    %811 = vmatpush2.msra.mxu0 0.0
    %812 = vmatprep.subr.mxu0 0.0
    %813 = vmatpush2.msra.mxu0 0.0
    %814 = vmatprep.subr.mxu0 0.0
    %815 = vmatpush2.msra.mxu0 0.0
    %816 = vmatprep.subr.mxu0 0.0
    %817 = vmatpush2.msra.mxu0 0.0
    %818 = vmatprep.subr.mxu0 0.0
    %819 = vmatpush2.msra.mxu0 0.0
    %820 = vmatprep.subr.mxu0 0.0
    %821 = vmatpush2.msra.mxu0 0.0
    %822 = vmatprep.subr.mxu0 0.0
    %823 = vmatpush2.msra.mxu0 0.0
    %824 = vmatprep.subr.mxu0 0.0
    %825 = vmatpush2.msra.mxu0 0.0
    %826 = vmatprep.mubr.f32.mxu0 0.0
    %827 = vmatmul.mubr.f32.gmra.mxu0 %v760
    %v828 = vpop.f32.mrf.mxu0
    %v829 = vadd.f32 0.0, %v828
    %v830 = vpop.f32.mrf.mxu0
    %831 = vdwg.mxu0
    %v833 = vsel %vm172, %v753, 0
    %v836 = vsel %vm172, %v829, 0
    %838 = vmatprep.subr.mxu0 0.0
    %839 = vmatpush1.msra.mxu0 0.0
    %840 = vmatprep.subr.mxu0 0.0
    %841 = vmatpush1.msra.mxu0 0.0
    %842 = vmatprep.subr.mxu0 0.0
    %843 = vmatpush1.msra.mxu0 0.0
    %844 = vmatprep.subr.mxu0 0.0
    %845 = vmatpush1.msra.mxu0 0.0
    %846 = vmatprep.subr.mxu0 0.0
    %847 = vmatpush1.msra.mxu0 0.0
    %848 = vmatprep.subr.mxu0 0.0
    %849 = vmatpush1.msra.mxu0 0.0
    %850 = vmatprep.subr.mxu0 0.0
    %851 = vmatpush1.msra.mxu0 0.0
    %852 = vmatprep.subr.mxu0 0.0
    %853 = vmatpush1.msra.mxu0 0.0
    %854 = vmatprep.subr.mxu0 0.0
    %855 = vmatpush1.msra.mxu0 0.0
    %856 = vmatprep.subr.mxu0 0.0
    %857 = vmatpush1.msra.mxu0 0.0
    %858 = vmatprep.subr.mxu0 0.0
    %859 = vmatpush1.msra.mxu0 0.0
    %860 = vmatprep.subr.mxu0 0.0
    %861 = vmatpush1.msra.mxu0 0.0
    %862 = vmatprep.subr.mxu0 0.0
    %863 = vmatpush1.msra.mxu0 0.0
    %864 = vmatprep.subr.mxu0 0.0
    %865 = vmatpush1.msra.mxu0 0.0
    %866 = vmatprep.subr.mxu0 0.0
    %867 = vmatpush1.msra.mxu0 0.0
    %868 = vmatprep.subr.mxu0 0.0
    %869 = vmatpush1.msra.mxu0 %v166
    %870 = vmatprep.subr.mxu0 0.0
    %871 = vmatpush2.msra.mxu0 0.0
    %872 = vmatprep.subr.mxu0 0.0
    %873 = vmatpush2.msra.mxu0 0.0
    %874 = vmatprep.subr.mxu0 0.0
    %875 = vmatpush2.msra.mxu0 0.0
    %876 = vmatprep.subr.mxu0 0.0
    %877 = vmatpush2.msra.mxu0 0.0
    %878 = vmatprep.subr.mxu0 0.0
    %879 = vmatpush2.msra.mxu0 0.0
    %880 = vmatprep.subr.mxu0 0.0
    %881 = vmatpush2.msra.mxu0 0.0
    %882 = vmatprep.subr.mxu0 0.0
    %883 = vmatpush2.msra.mxu0 0.0
    %884 = vmatprep.subr.mxu0 0.0
    %885 = vmatpush2.msra.mxu0 0.0
    %886 = vmatprep.subr.mxu0 0.0
    %887 = vmatpush2.msra.mxu0 0.0
    %888 = vmatprep.subr.mxu0 0.0
    %889 = vmatpush2.msra.mxu0 0.0
    %890 = vmatprep.subr.mxu0 0.0
    %891 = vmatpush2.msra.mxu0 0.0
    %892 = vmatprep.subr.mxu0 0.0
    %893 = vmatpush2.msra.mxu0 0.0
    %894 = vmatprep.subr.mxu0 0.0
    %895 = vmatpush2.msra.mxu0 0.0
    %896 = vmatprep.subr.mxu0 0.0
    %897 = vmatpush2.msra.mxu0 0.0
    %898 = vmatprep.subr.mxu0 0.0
    %899 = vmatpush2.msra.mxu0 0.0
    %900 = vmatprep.subr.mxu0 0.0
    %901 = vmatpush2.msra.mxu0 0.0
    %902 = vmatprep.mubr.f32.mxu0 0.0
    %903 = vmatmul.mubr.f32.gmra.mxu0 %v833
    %v904 = vpop.f32.mrf.mxu0
    %v905 = vadd.f32 0.0, %v904
    %v906 = vpop.f32.mrf.mxu0
    %907 = vmatprep.mubr.f32.mxu0 0.0
    %908 = vmatmul.mubr.f32.gmra.mxu0 %v836
    %v909 = vpop.f32.mrf.mxu0
    %v910 = vadd.f32 0.0, %v909
    %v911 = vpop.f32.mrf.mxu0
    %912 = vdwg.mxu0
    %v914 = vsel %vm172, %v421, 0
    %v917 = vsel %vm172, %v497, 0
    %919 = vmatprep.subr.mxu0 0.0
    %920 = vmatpush1.msra.mxu0 0.0
    %921 = vmatprep.subr.mxu0 0.0
    %922 = vmatpush1.msra.mxu0 0.0
    %923 = vmatprep.subr.mxu0 0.0
    %924 = vmatpush1.msra.mxu0 0.0
    %925 = vmatprep.subr.mxu0 0.0
    %926 = vmatpush1.msra.mxu0 0.0
    %927 = vmatprep.subr.mxu0 0.0
    %928 = vmatpush1.msra.mxu0 0.0
    %929 = vmatprep.subr.mxu0 0.0
    %930 = vmatpush1.msra.mxu0 0.0
    %931 = vmatprep.subr.mxu0 0.0
    %932 = vmatpush1.msra.mxu0 0.0
    %933 = vmatprep.subr.mxu0 0.0
    %934 = vmatpush1.msra.mxu0 0.0
    %935 = vmatprep.subr.mxu0 0.0
    %936 = vmatpush1.msra.mxu0 0.0
    %937 = vmatprep.subr.mxu0 0.0
    %938 = vmatpush1.msra.mxu0 0.0
    %939 = vmatprep.subr.mxu0 0.0
    %940 = vmatpush1.msra.mxu0 0.0
    %941 = vmatprep.subr.mxu0 0.0
    %942 = vmatpush1.msra.mxu0 0.0
    %943 = vmatprep.subr.mxu0 0.0
    %944 = vmatpush1.msra.mxu0 0.0
    %945 = vmatprep.subr.mxu0 0.0
    %946 = vmatpush1.msra.mxu0 0.0
    %947 = vmatprep.subr.mxu0 0.0
    %948 = vmatpush1.msra.mxu0 0.0
    %949 = vmatprep.subr.mxu0 0.0
    %950 = vmatpush1.msra.mxu0 %v165
    %951 = vmatprep.subr.mxu0 0.0
    %952 = vmatpush2.msra.mxu0 0.0
    %953 = vmatprep.subr.mxu0 0.0
    %954 = vmatpush2.msra.mxu0 0.0
    %955 = vmatprep.subr.mxu0 0.0
    %956 = vmatpush2.msra.mxu0 0.0
    %957 = vmatprep.subr.mxu0 0.0
    %958 = vmatpush2.msra.mxu0 0.0
    %959 = vmatprep.subr.mxu0 0.0
    %960 = vmatpush2.msra.mxu0 0.0
    %961 = vmatprep.subr.mxu0 0.0
    %962 = vmatpush2.msra.mxu0 0.0
    %963 = vmatprep.subr.mxu0 0.0
    %964 = vmatpush2.msra.mxu0 0.0
    %965 = vmatprep.subr.mxu0 0.0
    %966 = vmatpush2.msra.mxu0 0.0
    %967 = vmatprep.subr.mxu0 0.0
    %968 = vmatpush2.msra.mxu0 0.0
    %969 = vmatprep.subr.mxu0 0.0
    %970 = vmatpush2.msra.mxu0 0.0
    %971 = vmatprep.subr.mxu0 0.0
    %972 = vmatpush2.msra.mxu0 0.0
    %973 = vmatprep.subr.mxu0 0.0
    %974 = vmatpush2.msra.mxu0 0.0
    %975 = vmatprep.subr.mxu0 0.0
    %976 = vmatpush2.msra.mxu0 0.0
    %977 = vmatprep.subr.mxu0 0.0
    %978 = vmatpush2.msra.mxu0 0.0
    %979 = vmatprep.subr.mxu0 0.0
    %980 = vmatpush2.msra.mxu0 0.0
    %981 = vmatprep.subr.mxu0 0.0
    %982 = vmatpush2.msra.mxu0 0.0
    %983 = vmatprep.mubr.f32.mxu0 0.0
    %984 = vmatmul.mubr.f32.gmra.mxu0 %v914
    %v985 = vpop.f32.mrf.mxu0
    %v986 = vadd.f32 %v905, %v985
    %v987 = vpop.f32.mrf.mxu0
    %988 = vmatprep.mubr.f32.mxu0 0.0
    %989 = vmatmul.mubr.f32.gmra.mxu0 %v917
    %v990 = vpop.f32.mrf.mxu0
    %v991 = vadd.f32 %v910, %v990
    %v992 = vpop.f32.mrf.mxu0
    %993 = vdwg.mxu0
    %994 = vrot.lane.b32.xlu0 %v157, 80
    %v995 = vpop.permute.xlu0 %994
    %996 = vrot.lane.b32.xlu0 %v157, 112
    %v997 = vpop.permute.xlu0 %996
    %v998 = vsel %vm172, %v995, 0
    %v1000 = vsel %vm172, %v997, 0
    %1002 = vmatprep.subr.mxu0 0.0
    %1003 = vmatpush1.xpose.msra.mxu0 0.0
    %1004 = vmatprep.subr.mxu0 0.0
    %1005 = vmatpush1.xpose.msra.mxu0 0.0
    %1006 = vmatprep.subr.mxu0 0.0
    %1007 = vmatpush1.xpose.msra.mxu0 0.0
    %1008 = vmatprep.subr.mxu0 0.0
    %1009 = vmatpush1.xpose.msra.mxu0 0.0
    %1010 = vmatprep.subr.mxu0 0.0
    %1011 = vmatpush1.xpose.msra.mxu0 0.0
    %1012 = vmatprep.subr.mxu0 0.0
    %1013 = vmatpush1.xpose.msra.mxu0 0.0
    %1014 = vmatprep.subr.mxu0 0.0
    %1015 = vmatpush1.xpose.msra.mxu0 0.0
    %1016 = vmatprep.subr.mxu0 0.0
    %1017 = vmatpush1.xpose.msra.mxu0 0.0
    %1018 = vmatprep.subr.mxu0 0.0
    %1019 = vmatpush1.xpose.msra.mxu0 0.0
    %1020 = vmatprep.subr.mxu0 0.0
    %1021 = vmatpush1.xpose.msra.mxu0 0.0
    %1022 = vmatprep.subr.mxu0 0.0
    %1023 = vmatpush1.xpose.msra.mxu0 0.0
    %1024 = vmatprep.subr.mxu0 0.0
    %1025 = vmatpush1.xpose.msra.mxu0 0.0
    %1026 = vmatprep.subr.mxu0 0.0
    %1027 = vmatpush1.xpose.msra.mxu0 0.0
    %1028 = vmatprep.subr.mxu0 0.0
    %1029 = vmatpush1.xpose.msra.mxu0 0.0
    %1030 = vmatprep.subr.mxu0 0.0
    %1031 = vmatpush1.xpose.msra.mxu0 0.0
    %1032 = vmatprep.subr.mxu0 0.0
    %1033 = vmatpush1.xpose.msra.mxu0 %v1000
    %1034 = vmatprep.subr.mxu0 0.0
    %1035 = vmatpush2.xpose.msra.mxu0 0.0
    %1036 = vmatprep.subr.mxu0 0.0
    %1037 = vmatpush2.xpose.msra.mxu0 0.0
    %1038 = vmatprep.subr.mxu0 0.0
    %1039 = vmatpush2.xpose.msra.mxu0 0.0
    %1040 = vmatprep.subr.mxu0 0.0
    %1041 = vmatpush2.xpose.msra.mxu0 0.0
    %1042 = vmatprep.subr.mxu0 0.0
    %1043 = vmatpush2.xpose.msra.mxu0 0.0
    %1044 = vmatprep.subr.mxu0 0.0
    %1045 = vmatpush2.xpose.msra.mxu0 0.0
    %1046 = vmatprep.subr.mxu0 0.0
    %1047 = vmatpush2.xpose.msra.mxu0 0.0
    %1048 = vmatprep.subr.mxu0 0.0
    %1049 = vmatpush2.xpose.msra.mxu0 0.0
    %1050 = vmatprep.subr.mxu0 0.0
    %1051 = vmatpush2.xpose.msra.mxu0 0.0
    %1052 = vmatprep.subr.mxu0 0.0
    %1053 = vmatpush2.xpose.msra.mxu0 0.0
    %1054 = vmatprep.subr.mxu0 0.0
    %1055 = vmatpush2.xpose.msra.mxu0 0.0
    %1056 = vmatprep.subr.mxu0 0.0
    %1057 = vmatpush2.xpose.msra.mxu0 0.0
    %1058 = vmatprep.subr.mxu0 0.0
    %1059 = vmatpush2.xpose.msra.mxu0 0.0
    %1060 = vmatprep.subr.mxu0 0.0
    %1061 = vmatpush2.xpose.msra.mxu0 0.0
    %1062 = vmatprep.subr.mxu0 0.0
    %1063 = vmatpush2.xpose.msra.mxu0 0.0
    %1064 = vmatprep.subr.mxu0 0.0
    %1065 = vmatpush2.xpose.msra.mxu0 0.0
    %1066 = vmatprep.mubr.f32.mxu0 0.0
    %1067 = vmatmul.mubr.f32.gmra.mxu0 %v998
    %v1068 = vpop.f32.mrf.mxu0
    %v1069 = vadd.f32 0.0, %v1068
    %v1070 = vpop.f32.mrf.mxu0
    %1071 = vdwg.mxu0
    %1072 = vrot.lane.b32.xlu0 %v162, 80
    %v1073 = vpop.permute.xlu0 %1072
    %1074 = vrot.lane.b32.xlu0 %v162, 112
    %v1075 = vpop.permute.xlu0 %1074
    %v1076 = vsel %vm172, %v1073, 0
    %v1078 = vsel %vm172, %v1075, 0
    %1080 = vmatprep.subr.mxu0 0.0
    %1081 = vmatpush1.xpose.msra.mxu0 0.0
    %1082 = vmatprep.subr.mxu0 0.0
    %1083 = vmatpush1.xpose.msra.mxu0 0.0
    %1084 = vmatprep.subr.mxu0 0.0
    %1085 = vmatpush1.xpose.msra.mxu0 0.0
    %1086 = vmatprep.subr.mxu0 0.0
    %1087 = vmatpush1.xpose.msra.mxu0 0.0
    %1088 = vmatprep.subr.mxu0 0.0
    %1089 = vmatpush1.xpose.msra.mxu0 0.0
    %1090 = vmatprep.subr.mxu0 0.0
    %1091 = vmatpush1.xpose.msra.mxu0 0.0
    %1092 = vmatprep.subr.mxu0 0.0
    %1093 = vmatpush1.xpose.msra.mxu0 0.0
    %1094 = vmatprep.subr.mxu0 0.0
    %1095 = vmatpush1.xpose.msra.mxu0 0.0
    %1096 = vmatprep.subr.mxu0 0.0
    %1097 = vmatpush1.xpose.msra.mxu0 0.0
    %1098 = vmatprep.subr.mxu0 0.0
    %1099 = vmatpush1.xpose.msra.mxu0 0.0
    %1100 = vmatprep.subr.mxu0 0.0
    %1101 = vmatpush1.xpose.msra.mxu0 0.0
    %1102 = vmatprep.subr.mxu0 0.0
    %1103 = vmatpush1.xpose.msra.mxu0 0.0
    %1104 = vmatprep.subr.mxu0 0.0
    %1105 = vmatpush1.xpose.msra.mxu0 0.0
    %1106 = vmatprep.subr.mxu0 0.0
    %1107 = vmatpush1.xpose.msra.mxu0 0.0
    %1108 = vmatprep.subr.mxu0 0.0
    %1109 = vmatpush1.xpose.msra.mxu0 0.0
    %1110 = vmatprep.subr.mxu0 0.0
    %1111 = vmatpush1.xpose.msra.mxu0 %v1078
    %1112 = vmatprep.subr.mxu0 0.0
    %1113 = vmatpush2.xpose.msra.mxu0 0.0
    %1114 = vmatprep.subr.mxu0 0.0
    %1115 = vmatpush2.xpose.msra.mxu0 0.0
    %1116 = vmatprep.subr.mxu0 0.0
    %1117 = vmatpush2.xpose.msra.mxu0 0.0
    %1118 = vmatprep.subr.mxu0 0.0
    %1119 = vmatpush2.xpose.msra.mxu0 0.0
    %1120 = vmatprep.subr.mxu0 0.0
    %1121 = vmatpush2.xpose.msra.mxu0 0.0
    %1122 = vmatprep.subr.mxu0 0.0
    %1123 = vmatpush2.xpose.msra.mxu0 0.0
    %1124 = vmatprep.subr.mxu0 0.0
    %1125 = vmatpush2.xpose.msra.mxu0 0.0
    %1126 = vmatprep.subr.mxu0 0.0
    %1127 = vmatpush2.xpose.msra.mxu0 0.0
    %1128 = vmatprep.subr.mxu0 0.0
    %1129 = vmatpush2.xpose.msra.mxu0 0.0
    %1130 = vmatprep.subr.mxu0 0.0
    %1131 = vmatpush2.xpose.msra.mxu0 0.0
    %1132 = vmatprep.subr.mxu0 0.0
    %1133 = vmatpush2.xpose.msra.mxu0 0.0
    %1134 = vmatprep.subr.mxu0 0.0
    %1135 = vmatpush2.xpose.msra.mxu0 0.0
    %1136 = vmatprep.subr.mxu0 0.0
    %1137 = vmatpush2.xpose.msra.mxu0 0.0
    %1138 = vmatprep.subr.mxu0 0.0
    %1139 = vmatpush2.xpose.msra.mxu0 0.0
    %1140 = vmatprep.subr.mxu0 0.0
    %1141 = vmatpush2.xpose.msra.mxu0 0.0
    %1142 = vmatprep.subr.mxu0 0.0
    %1143 = vmatpush2.xpose.msra.mxu0 0.0
    %1144 = vmatprep.mubr.f32.mxu0 0.0
    %1145 = vmatmul.mubr.f32.gmra.mxu0 %v1076
    %v1146 = vpop.f32.mrf.mxu0
    %v1147 = vadd.f32 0.0, %v1146
    %v1148 = vpop.f32.mrf.mxu0
    %1149 = vdwg.mxu0
    %v1150 = vmul.f32 %v1069, 0.35355338
    %v1151 = vmul.f32 %v1147, 0.35355338
    %v1152 = vsel %vm172, %v1150, -inf
    %1153 = vmax.xlane.f32.xlu0 %v1152
    %v1154 = vpop.xlane.xlu0 %1153
    %v1155 = vsel %vm172, %v1151, -inf
    %1156 = vmax.xlane.f32.xlu0 %v1155
    %v1157 = vpop.xlane.xlu0 %1156
    %v1158 = vsub.f32 %v1150, %v1154
    %v1159 = vsub.f32 %v1151, %v1157
    %v1160 = vmul.f32 %v1158, 1.442695
    %v1161 = vpow.pop %v1160
    %v1162 = vmul.f32 %v1159, 1.442695
    %v1163 = vpow.pop %v1162
    %v1164 = vsel %vm172, %v1161, 0.0
    %1165 = vadd.xlane.f32.xlu0 %v1164
    %v1166 = vpop.xlane.xlu0 %1165
    %v1167 = vsel %vm172, %v1163, 0.0
    %1168 = vadd.xlane.f32.xlu0 %v1167
    %v1169 = vpop.xlane.xlu0 %1168
    %v1170 = vrcp.pop %v1166
    %v1171 = vrcp.pop %v1169
    %v1172 = vmul.f32 %v1161, %v1170
    %v1173 = vmul.f32 %v1163, %v1171
    %1174 = vrot.lane.b32.xlu0 %v157, 48
    %v1175 = vpop.permute.xlu0 %1174
    %v1178 = vsel %vm172, %v1172, 0
    %1180 = vmatprep.subr.mxu0 0.0
    %1181 = vmatpush1.msra.mxu0 0.0
    %1182 = vmatprep.subr.mxu0 0.0
    %1183 = vmatpush1.msra.mxu0 0.0
    %1184 = vmatprep.subr.mxu0 0.0
    %1185 = vmatpush1.msra.mxu0 0.0
    %1186 = vmatprep.subr.mxu0 0.0
    %1187 = vmatpush1.msra.mxu0 0.0
    %1188 = vmatprep.subr.mxu0 0.0
    %1189 = vmatpush1.msra.mxu0 0.0
    %1190 = vmatprep.subr.mxu0 0.0
    %1191 = vmatpush1.msra.mxu0 0.0
    %1192 = vmatprep.subr.mxu0 0.0
    %1193 = vmatpush1.msra.mxu0 0.0
    %1194 = vmatprep.subr.mxu0 0.0
    %1195 = vmatpush1.msra.mxu0 0.0
    %1196 = vmatprep.subr.mxu0 0.0
    %1197 = vmatpush1.msra.mxu0 0.0
    %1198 = vmatprep.subr.mxu0 0.0
    %1199 = vmatpush1.msra.mxu0 0.0
    %1200 = vmatprep.subr.mxu0 0.0
    %1201 = vmatpush1.msra.mxu0 0.0
    %1202 = vmatprep.subr.mxu0 0.0
    %1203 = vmatpush1.msra.mxu0 0.0
    %1204 = vmatprep.subr.mxu0 0.0
    %1205 = vmatpush1.msra.mxu0 0.0
    %1206 = vmatprep.subr.mxu0 0.0
    %1207 = vmatpush1.msra.mxu0 0.0
    %1208 = vmatprep.subr.mxu0 0.0
    %1209 = vmatpush1.msra.mxu0 0.0
    %1210 = vmatprep.subr.mxu0 0.0
    %1211 = vmatpush1.msra.mxu0 %v1175
    %1212 = vmatprep.subr.mxu0 0.0
    %1213 = vmatpush2.msra.mxu0 0.0
    %1214 = vmatprep.subr.mxu0 0.0
    %1215 = vmatpush2.msra.mxu0 0.0
    %1216 = vmatprep.subr.mxu0 0.0
    %1217 = vmatpush2.msra.mxu0 0.0
    %1218 = vmatprep.subr.mxu0 0.0
    %1219 = vmatpush2.msra.mxu0 0.0
    %1220 = vmatprep.subr.mxu0 0.0
    %1221 = vmatpush2.msra.mxu0 0.0
    %1222 = vmatprep.subr.mxu0 0.0
    %1223 = vmatpush2.msra.mxu0 0.0
    %1224 = vmatprep.subr.mxu0 0.0
    %1225 = vmatpush2.msra.mxu0 0.0
    %1226 = vmatprep.subr.mxu0 0.0
    %1227 = vmatpush2.msra.mxu0 0.0
    %1228 = vmatprep.subr.mxu0 0.0
    %1229 = vmatpush2.msra.mxu0 0.0
    %1230 = vmatprep.subr.mxu0 0.0
    %1231 = vmatpush2.msra.mxu0 0.0
    %1232 = vmatprep.subr.mxu0 0.0
    %1233 = vmatpush2.msra.mxu0 0.0
    %1234 = vmatprep.subr.mxu0 0.0
    %1235 = vmatpush2.msra.mxu0 0.0
    %1236 = vmatprep.subr.mxu0 0.0
    %1237 = vmatpush2.msra.mxu0 0.0
    %1238 = vmatprep.subr.mxu0 0.0
    %1239 = vmatpush2.msra.mxu0 0.0
    %1240 = vmatprep.subr.mxu0 0.0
    %1241 = vmatpush2.msra.mxu0 0.0
    %1242 = vmatprep.subr.mxu0 0.0
    %1243 = vmatpush2.msra.mxu0 0.0
    %1244 = vmatprep.mubr.f32.mxu0 0.0
    %1245 = vmatmul.mubr.f32.gmra.mxu0 %v1178
    %v1246 = vpop.f32.mrf.mxu0
    %v1247 = vadd.f32 0.0, %v1246
    %v1248 = vpop.f32.mrf.mxu0
    %1249 = vdwg.mxu0
    %1250 = vrot.lane.b32.xlu0 %v162, 48
    %v1251 = vpop.permute.xlu0 %1250
    %v1254 = vsel %vm172, %v1173, 0
    %1256 = vmatprep.subr.mxu0 0.0
    %1257 = vmatpush1.msra.mxu0 0.0
    %1258 = vmatprep.subr.mxu0 0.0
    %1259 = vmatpush1.msra.mxu0 0.0
    %1260 = vmatprep.subr.mxu0 0.0
    %1261 = vmatpush1.msra.mxu0 0.0
    %1262 = vmatprep.subr.mxu0 0.0
    %1263 = vmatpush1.msra.mxu0 0.0
    %1264 = vmatprep.subr.mxu0 0.0
    %1265 = vmatpush1.msra.mxu0 0.0
    %1266 = vmatprep.subr.mxu0 0.0
    %1267 = vmatpush1.msra.mxu0 0.0
    %1268 = vmatprep.subr.mxu0 0.0
    %1269 = vmatpush1.msra.mxu0 0.0
    %1270 = vmatprep.subr.mxu0 0.0
    %1271 = vmatpush1.msra.mxu0 0.0
    %1272 = vmatprep.subr.mxu0 0.0
    %1273 = vmatpush1.msra.mxu0 0.0
    %1274 = vmatprep.subr.mxu0 0.0
    %1275 = vmatpush1.msra.mxu0 0.0
    %1276 = vmatprep.subr.mxu0 0.0
    %1277 = vmatpush1.msra.mxu0 0.0
    %1278 = vmatprep.subr.mxu0 0.0
    %1279 = vmatpush1.msra.mxu0 0.0
    %1280 = vmatprep.subr.mxu0 0.0
    %1281 = vmatpush1.msra.mxu0 0.0
    %1282 = vmatprep.subr.mxu0 0.0
    %1283 = vmatpush1.msra.mxu0 0.0
    %1284 = vmatprep.subr.mxu0 0.0
    %1285 = vmatpush1.msra.mxu0 0.0
    %1286 = vmatprep.subr.mxu0 0.0
    %1287 = vmatpush1.msra.mxu0 %v1251
    %1288 = vmatprep.subr.mxu0 0.0
    %1289 = vmatpush2.msra.mxu0 0.0
    %1290 = vmatprep.subr.mxu0 0.0
    %1291 = vmatpush2.msra.mxu0 0.0
    %1292 = vmatprep.subr.mxu0 0.0
    %1293 = vmatpush2.msra.mxu0 0.0
    %1294 = vmatprep.subr.mxu0 0.0
    %1295 = vmatpush2.msra.mxu0 0.0
    %1296 = vmatprep.subr.mxu0 0.0
    %1297 = vmatpush2.msra.mxu0 0.0
    %1298 = vmatprep.subr.mxu0 0.0
    %1299 = vmatpush2.msra.mxu0 0.0
    %1300 = vmatprep.subr.mxu0 0.0
    %1301 = vmatpush2.msra.mxu0 0.0
    %1302 = vmatprep.subr.mxu0 0.0
    %1303 = vmatpush2.msra.mxu0 0.0
    %1304 = vmatprep.subr.mxu0 0.0
    %1305 = vmatpush2.msra.mxu0 0.0
    %1306 = vmatprep.subr.mxu0 0.0
    %1307 = vmatpush2.msra.mxu0 0.0
    %1308 = vmatprep.subr.mxu0 0.0
    %1309 = vmatpush2.msra.mxu0 0.0
    %1310 = vmatprep.subr.mxu0 0.0
    %1311 = vmatpush2.msra.mxu0 0.0
    %1312 = vmatprep.subr.mxu0 0.0
    %1313 = vmatpush2.msra.mxu0 0.0
    %1314 = vmatprep.subr.mxu0 0.0
    %1315 = vmatpush2.msra.mxu0 0.0
    %1316 = vmatprep.subr.mxu0 0.0
    %1317 = vmatpush2.msra.mxu0 0.0
    %1318 = vmatprep.subr.mxu0 0.0
    %1319 = vmatpush2.msra.mxu0 0.0
    %1320 = vmatprep.mubr.f32.mxu0 0.0
    %1321 = vmatmul.mubr.f32.gmra.mxu0 %v1254
    %v1322 = vpop.f32.mrf.mxu0
    %v1323 = vadd.f32 0.0, %v1322
    %v1324 = vpop.f32.mrf.mxu0
    %1325 = vdwg.mxu0
    %v1327 = vsel %vm172, %v1247, 0
    %v1330 = vsel %vm172, %v1323, 0
    %1332 = vmatprep.subr.mxu0 0.0
    %1333 = vmatpush1.msra.mxu0 0.0
    %1334 = vmatprep.subr.mxu0 0.0
    %1335 = vmatpush1.msra.mxu0 0.0
    %1336 = vmatprep.subr.mxu0 0.0
    %1337 = vmatpush1.msra.mxu0 0.0
    %1338 = vmatprep.subr.mxu0 0.0
    %1339 = vmatpush1.msra.mxu0 0.0
    %1340 = vmatprep.subr.mxu0 0.0
    %1341 = vmatpush1.msra.mxu0 0.0
    %1342 = vmatprep.subr.mxu0 0.0
    %1343 = vmatpush1.msra.mxu0 0.0
    %1344 = vmatprep.subr.mxu0 0.0
    %1345 = vmatpush1.msra.mxu0 0.0
    %1346 = vmatprep.subr.mxu0 0.0
    %1347 = vmatpush1.msra.mxu0 0.0
    %1348 = vmatprep.subr.mxu0 0.0
    %1349 = vmatpush1.msra.mxu0 0.0
    %1350 = vmatprep.subr.mxu0 0.0
    %1351 = vmatpush1.msra.mxu0 0.0
    %1352 = vmatprep.subr.mxu0 0.0
    %1353 = vmatpush1.msra.mxu0 0.0
    %1354 = vmatprep.subr.mxu0 0.0
    %1355 = vmatpush1.msra.mxu0 0.0
    %1356 = vmatprep.subr.mxu0 0.0
    %1357 = vmatpush1.msra.mxu0 0.0
    %1358 = vmatprep.subr.mxu0 0.0
    %1359 = vmatpush1.msra.mxu0 0.0
    %1360 = vmatprep.subr.mxu0 0.0
    %1361 = vmatpush1.msra.mxu0 0.0
    %1362 = vmatprep.subr.mxu0 0.0
    %1363 = vmatpush1.msra.mxu0 %v167
    %1364 = vmatprep.subr.mxu0 0.0
    %1365 = vmatpush2.msra.mxu0 0.0
    %1366 = vmatprep.subr.mxu0 0.0
    %1367 = vmatpush2.msra.mxu0 0.0
    %1368 = vmatprep.subr.mxu0 0.0
    %1369 = vmatpush2.msra.mxu0 0.0
    %1370 = vmatprep.subr.mxu0 0.0
    %1371 = vmatpush2.msra.mxu0 0.0
    %1372 = vmatprep.subr.mxu0 0.0
    %1373 = vmatpush2.msra.mxu0 0.0
    %1374 = vmatprep.subr.mxu0 0.0
    %1375 = vmatpush2.msra.mxu0 0.0
    %1376 = vmatprep.subr.mxu0 0.0
    %1377 = vmatpush2.msra.mxu0 0.0
    %1378 = vmatprep.subr.mxu0 0.0
    %1379 = vmatpush2.msra.mxu0 0.0
    %1380 = vmatprep.subr.mxu0 0.0
    %1381 = vmatpush2.msra.mxu0 0.0
    %1382 = vmatprep.subr.mxu0 0.0
    %1383 = vmatpush2.msra.mxu0 0.0
    %1384 = vmatprep.subr.mxu0 0.0
    %1385 = vmatpush2.msra.mxu0 0.0
    %1386 = vmatprep.subr.mxu0 0.0
    %1387 = vmatpush2.msra.mxu0 0.0
    %1388 = vmatprep.subr.mxu0 0.0
    %1389 = vmatpush2.msra.mxu0 0.0
    %1390 = vmatprep.subr.mxu0 0.0
    %1391 = vmatpush2.msra.mxu0 0.0
    %1392 = vmatprep.subr.mxu0 0.0
    %1393 = vmatpush2.msra.mxu0 0.0
    %1394 = vmatprep.subr.mxu0 0.0
    %1395 = vmatpush2.msra.mxu0 0.0
    %1396 = vmatprep.mubr.f32.mxu0 0.0
    %1397 = vmatmul.mubr.f32.gmra.mxu0 %v1327
    %v1398 = vpop.f32.mrf.mxu0
    %v1399 = vadd.f32 0.0, %v1398
    %v1400 = vpop.f32.mrf.mxu0
    %1401 = vmatprep.mubr.f32.mxu0 0.0
    %1402 = vmatmul.mubr.f32.gmra.mxu0 %v1330
    %v1403 = vpop.f32.mrf.mxu0
    %v1404 = vadd.f32 0.0, %v1403
    %v1405 = vpop.f32.mrf.mxu0
    %1406 = vdwg.mxu0
    %v1407 = vadd.f32 %v986, %v1399
    %v1408 = vadd.f32 %v991, %v1404
    %1409 = vrot.lane.b32.xlu0 %v157, 72
    %v1410 = vpop.permute.xlu0 %1409
    %1411 = vrot.lane.b32.xlu0 %v157, 104
    %v1412 = vpop.permute.xlu0 %1411
    %v1413 = vsel %vm172, %v1410, 0
    %v1415 = vsel %vm172, %v1412, 0
    %1417 = vmatprep.subr.mxu0 0.0
    %1418 = vmatpush1.xpose.msra.mxu0 0.0
    %1419 = vmatprep.subr.mxu0 0.0
    %1420 = vmatpush1.xpose.msra.mxu0 0.0
    %1421 = vmatprep.subr.mxu0 0.0
    %1422 = vmatpush1.xpose.msra.mxu0 0.0
    %1423 = vmatprep.subr.mxu0 0.0
    %1424 = vmatpush1.xpose.msra.mxu0 0.0
    %1425 = vmatprep.subr.mxu0 0.0
    %1426 = vmatpush1.xpose.msra.mxu0 0.0
    %1427 = vmatprep.subr.mxu0 0.0
    %1428 = vmatpush1.xpose.msra.mxu0 0.0
    %1429 = vmatprep.subr.mxu0 0.0
    %1430 = vmatpush1.xpose.msra.mxu0 0.0
    %1431 = vmatprep.subr.mxu0 0.0
    %1432 = vmatpush1.xpose.msra.mxu0 0.0
    %1433 = vmatprep.subr.mxu0 0.0
    %1434 = vmatpush1.xpose.msra.mxu0 0.0
    %1435 = vmatprep.subr.mxu0 0.0
    %1436 = vmatpush1.xpose.msra.mxu0 0.0
    %1437 = vmatprep.subr.mxu0 0.0
    %1438 = vmatpush1.xpose.msra.mxu0 0.0
    %1439 = vmatprep.subr.mxu0 0.0
    %1440 = vmatpush1.xpose.msra.mxu0 0.0
    %1441 = vmatprep.subr.mxu0 0.0
    %1442 = vmatpush1.xpose.msra.mxu0 0.0
    %1443 = vmatprep.subr.mxu0 0.0
    %1444 = vmatpush1.xpose.msra.mxu0 0.0
    %1445 = vmatprep.subr.mxu0 0.0
    %1446 = vmatpush1.xpose.msra.mxu0 0.0
    %1447 = vmatprep.subr.mxu0 0.0
    %1448 = vmatpush1.xpose.msra.mxu0 %v1415
    %1449 = vmatprep.subr.mxu0 0.0
    %1450 = vmatpush2.xpose.msra.mxu0 0.0
    %1451 = vmatprep.subr.mxu0 0.0
    %1452 = vmatpush2.xpose.msra.mxu0 0.0
    %1453 = vmatprep.subr.mxu0 0.0
    %1454 = vmatpush2.xpose.msra.mxu0 0.0
    %1455 = vmatprep.subr.mxu0 0.0
    %1456 = vmatpush2.xpose.msra.mxu0 0.0
    %1457 = vmatprep.subr.mxu0 0.0
    %1458 = vmatpush2.xpose.msra.mxu0 0.0
    %1459 = vmatprep.subr.mxu0 0.0
    %1460 = vmatpush2.xpose.msra.mxu0 0.0
    %1461 = vmatprep.subr.mxu0 0.0
    %1462 = vmatpush2.xpose.msra.mxu0 0.0
    %1463 = vmatprep.subr.mxu0 0.0
    %1464 = vmatpush2.xpose.msra.mxu0 0.0
    %1465 = vmatprep.subr.mxu0 0.0
    %1466 = vmatpush2.xpose.msra.mxu0 0.0
    %1467 = vmatprep.subr.mxu0 0.0
    %1468 = vmatpush2.xpose.msra.mxu0 0.0
    %1469 = vmatprep.subr.mxu0 0.0
    %1470 = vmatpush2.xpose.msra.mxu0 0.0
    %1471 = vmatprep.subr.mxu0 0.0
    %1472 = vmatpush2.xpose.msra.mxu0 0.0
    %1473 = vmatprep.subr.mxu0 0.0
    %1474 = vmatpush2.xpose.msra.mxu0 0.0
    %1475 = vmatprep.subr.mxu0 0.0
    %1476 = vmatpush2.xpose.msra.mxu0 0.0
    %1477 = vmatprep.subr.mxu0 0.0
    %1478 = vmatpush2.xpose.msra.mxu0 0.0
    %1479 = vmatprep.subr.mxu0 0.0
    %1480 = vmatpush2.xpose.msra.mxu0 0.0
    %1481 = vmatprep.mubr.f32.mxu0 0.0
    %1482 = vmatmul.mubr.f32.gmra.mxu0 %v1413
    %v1483 = vpop.f32.mrf.mxu0
    %v1484 = vadd.f32 0.0, %v1483
    %v1485 = vpop.f32.mrf.mxu0
    %1486 = vdwg.mxu0
    %1487 = vrot.lane.b32.xlu0 %v162, 72
    %v1488 = vpop.permute.xlu0 %1487
    %1489 = vrot.lane.b32.xlu0 %v162, 104
    %v1490 = vpop.permute.xlu0 %1489
    %v1491 = vsel %vm172, %v1488, 0
    %v1493 = vsel %vm172, %v1490, 0
    %1495 = vmatprep.subr.mxu0 0.0
    %1496 = vmatpush1.xpose.msra.mxu0 0.0
    %1497 = vmatprep.subr.mxu0 0.0
    %1498 = vmatpush1.xpose.msra.mxu0 0.0
    %1499 = vmatprep.subr.mxu0 0.0
    %1500 = vmatpush1.xpose.msra.mxu0 0.0
    %1501 = vmatprep.subr.mxu0 0.0
    %1502 = vmatpush1.xpose.msra.mxu0 0.0
    %1503 = vmatprep.subr.mxu0 0.0
    %1504 = vmatpush1.xpose.msra.mxu0 0.0
    %1505 = vmatprep.subr.mxu0 0.0
    %1506 = vmatpush1.xpose.msra.mxu0 0.0
    %1507 = vmatprep.subr.mxu0 0.0
    %1508 = vmatpush1.xpose.msra.mxu0 0.0
    %1509 = vmatprep.subr.mxu0 0.0
    %1510 = vmatpush1.xpose.msra.mxu0 0.0
    %1511 = vmatprep.subr.mxu0 0.0
    %1512 = vmatpush1.xpose.msra.mxu0 0.0
    %1513 = vmatprep.subr.mxu0 0.0
    %1514 = vmatpush1.xpose.msra.mxu0 0.0
    %1515 = vmatprep.subr.mxu0 0.0
    %1516 = vmatpush1.xpose.msra.mxu0 0.0
    %1517 = vmatprep.subr.mxu0 0.0
    %1518 = vmatpush1.xpose.msra.mxu0 0.0
    %1519 = vmatprep.subr.mxu0 0.0
    %1520 = vmatpush1.xpose.msra.mxu0 0.0
    %1521 = vmatprep.subr.mxu0 0.0
    %1522 = vmatpush1.xpose.msra.mxu0 0.0
    %1523 = vmatprep.subr.mxu0 0.0
    %1524 = vmatpush1.xpose.msra.mxu0 0.0
    %1525 = vmatprep.subr.mxu0 0.0
    %1526 = vmatpush1.xpose.msra.mxu0 %v1493
    %1527 = vmatprep.subr.mxu0 0.0
    %1528 = vmatpush2.xpose.msra.mxu0 0.0
    %1529 = vmatprep.subr.mxu0 0.0
    %1530 = vmatpush2.xpose.msra.mxu0 0.0
    %1531 = vmatprep.subr.mxu0 0.0
    %1532 = vmatpush2.xpose.msra.mxu0 0.0
    %1533 = vmatprep.subr.mxu0 0.0
    %1534 = vmatpush2.xpose.msra.mxu0 0.0
    %1535 = vmatprep.subr.mxu0 0.0
    %1536 = vmatpush2.xpose.msra.mxu0 0.0
    %1537 = vmatprep.subr.mxu0 0.0
    %1538 = vmatpush2.xpose.msra.mxu0 0.0
    %1539 = vmatprep.subr.mxu0 0.0
    %1540 = vmatpush2.xpose.msra.mxu0 0.0
    %1541 = vmatprep.subr.mxu0 0.0
    %1542 = vmatpush2.xpose.msra.mxu0 0.0
    %1543 = vmatprep.subr.mxu0 0.0
    %1544 = vmatpush2.xpose.msra.mxu0 0.0
    %1545 = vmatprep.subr.mxu0 0.0
    %1546 = vmatpush2.xpose.msra.mxu0 0.0
    %1547 = vmatprep.subr.mxu0 0.0
    %1548 = vmatpush2.xpose.msra.mxu0 0.0
    %1549 = vmatprep.subr.mxu0 0.0
    %1550 = vmatpush2.xpose.msra.mxu0 0.0
    %1551 = vmatprep.subr.mxu0 0.0
    %1552 = vmatpush2.xpose.msra.mxu0 0.0
    %1553 = vmatprep.subr.mxu0 0.0
    %1554 = vmatpush2.xpose.msra.mxu0 0.0
    %1555 = vmatprep.subr.mxu0 0.0
    %1556 = vmatpush2.xpose.msra.mxu0 0.0
    %1557 = vmatprep.subr.mxu0 0.0
    %1558 = vmatpush2.xpose.msra.mxu0 0.0
    %1559 = vmatprep.mubr.f32.mxu0 0.0
    %1560 = vmatmul.mubr.f32.gmra.mxu0 %v1491
    %v1561 = vpop.f32.mrf.mxu0
    %v1562 = vadd.f32 0.0, %v1561
    %v1563 = vpop.f32.mrf.mxu0
    %1564 = vdwg.mxu0
    %v1565 = vmul.f32 %v1484, 0.35355338
    %v1566 = vmul.f32 %v1562, 0.35355338
    %v1567 = vsel %vm172, %v1565, -inf
    %1568 = vmax.xlane.f32.xlu0 %v1567
    %v1569 = vpop.xlane.xlu0 %1568
    %v1570 = vsel %vm172, %v1566, -inf
    %1571 = vmax.xlane.f32.xlu0 %v1570
    %v1572 = vpop.xlane.xlu0 %1571
    %v1573 = vsub.f32 %v1565, %v1569
    %v1574 = vsub.f32 %v1566, %v1572
    %v1575 = vmul.f32 %v1573, 1.442695
    %v1576 = vpow.pop %v1575
    %v1577 = vmul.f32 %v1574, 1.442695
    %v1578 = vpow.pop %v1577
    %v1579 = vsel %vm172, %v1576, 0.0
    %1580 = vadd.xlane.f32.xlu0 %v1579
    %v1581 = vpop.xlane.xlu0 %1580
    %v1582 = vsel %vm172, %v1578, 0.0
    %1583 = vadd.xlane.f32.xlu0 %v1582
    %v1584 = vpop.xlane.xlu0 %1583
    %v1585 = vrcp.pop %v1581
    %v1586 = vrcp.pop %v1584
    %v1587 = vmul.f32 %v1576, %v1585
    %v1588 = vmul.f32 %v1578, %v1586
    %1589 = vrot.lane.b32.xlu0 %v157, 40
    %v1590 = vpop.permute.xlu0 %1589
    %v1593 = vsel %vm172, %v1587, 0
    %1595 = vmatprep.subr.mxu0 0.0
    %1596 = vmatpush1.msra.mxu0 0.0
    %1597 = vmatprep.subr.mxu0 0.0
    %1598 = vmatpush1.msra.mxu0 0.0
    %1599 = vmatprep.subr.mxu0 0.0
    %1600 = vmatpush1.msra.mxu0 0.0
    %1601 = vmatprep.subr.mxu0 0.0
    %1602 = vmatpush1.msra.mxu0 0.0
    %1603 = vmatprep.subr.mxu0 0.0
    %1604 = vmatpush1.msra.mxu0 0.0
    %1605 = vmatprep.subr.mxu0 0.0
    %1606 = vmatpush1.msra.mxu0 0.0
    %1607 = vmatprep.subr.mxu0 0.0
    %1608 = vmatpush1.msra.mxu0 0.0
    %1609 = vmatprep.subr.mxu0 0.0
    %1610 = vmatpush1.msra.mxu0 0.0
    %1611 = vmatprep.subr.mxu0 0.0
    %1612 = vmatpush1.msra.mxu0 0.0
    %1613 = vmatprep.subr.mxu0 0.0
    %1614 = vmatpush1.msra.mxu0 0.0
    %1615 = vmatprep.subr.mxu0 0.0
    %1616 = vmatpush1.msra.mxu0 0.0
    %1617 = vmatprep.subr.mxu0 0.0
    %1618 = vmatpush1.msra.mxu0 0.0
    %1619 = vmatprep.subr.mxu0 0.0
    %1620 = vmatpush1.msra.mxu0 0.0
    %1621 = vmatprep.subr.mxu0 0.0
    %1622 = vmatpush1.msra.mxu0 0.0
    %1623 = vmatprep.subr.mxu0 0.0
    %1624 = vmatpush1.msra.mxu0 0.0
    %1625 = vmatprep.subr.mxu0 0.0
    %1626 = vmatpush1.msra.mxu0 %v1590
    %1627 = vmatprep.subr.mxu0 0.0
    %1628 = vmatpush2.msra.mxu0 0.0
    %1629 = vmatprep.subr.mxu0 0.0
    %1630 = vmatpush2.msra.mxu0 0.0
    %1631 = vmatprep.subr.mxu0 0.0
    %1632 = vmatpush2.msra.mxu0 0.0
    %1633 = vmatprep.subr.mxu0 0.0
    %1634 = vmatpush2.msra.mxu0 0.0
    %1635 = vmatprep.subr.mxu0 0.0
    %1636 = vmatpush2.msra.mxu0 0.0
    %1637 = vmatprep.subr.mxu0 0.0
    %1638 = vmatpush2.msra.mxu0 0.0
    %1639 = vmatprep.subr.mxu0 0.0
    %1640 = vmatpush2.msra.mxu0 0.0
    %1641 = vmatprep.subr.mxu0 0.0
    %1642 = vmatpush2.msra.mxu0 0.0
    %1643 = vmatprep.subr.mxu0 0.0
    %1644 = vmatpush2.msra.mxu0 0.0
    %1645 = vmatprep.subr.mxu0 0.0
    %1646 = vmatpush2.msra.mxu0 0.0
    %1647 = vmatprep.subr.mxu0 0.0
    %1648 = vmatpush2.msra.mxu0 0.0
    %1649 = vmatprep.subr.mxu0 0.0
    %1650 = vmatpush2.msra.mxu0 0.0
    %1651 = vmatprep.subr.mxu0 0.0
    %1652 = vmatpush2.msra.mxu0 0.0
    %1653 = vmatprep.subr.mxu0 0.0
    %1654 = vmatpush2.msra.mxu0 0.0
    %1655 = vmatprep.subr.mxu0 0.0
    %1656 = vmatpush2.msra.mxu0 0.0
    %1657 = vmatprep.subr.mxu0 0.0
    %1658 = vmatpush2.msra.mxu0 0.0
    %1659 = vmatprep.mubr.f32.mxu0 0.0
    %1660 = vmatmul.mubr.f32.gmra.mxu0 %v1593
    %v1661 = vpop.f32.mrf.mxu0
    %v1662 = vadd.f32 0.0, %v1661
    %v1663 = vpop.f32.mrf.mxu0
    %1664 = vdwg.mxu0
    %1665 = vrot.lane.b32.xlu0 %v162, 40
    %v1666 = vpop.permute.xlu0 %1665
    %v1669 = vsel %vm172, %v1588, 0
    %1671 = vmatprep.subr.mxu0 0.0
    %1672 = vmatpush1.msra.mxu0 0.0
    %1673 = vmatprep.subr.mxu0 0.0
    %1674 = vmatpush1.msra.mxu0 0.0
    %1675 = vmatprep.subr.mxu0 0.0
    %1676 = vmatpush1.msra.mxu0 0.0
    %1677 = vmatprep.subr.mxu0 0.0
    %1678 = vmatpush1.msra.mxu0 0.0
    %1679 = vmatprep.subr.mxu0 0.0
    %1680 = vmatpush1.msra.mxu0 0.0
    %1681 = vmatprep.subr.mxu0 0.0
    %1682 = vmatpush1.msra.mxu0 0.0
    %1683 = vmatprep.subr.mxu0 0.0
    %1684 = vmatpush1.msra.mxu0 0.0
    %1685 = vmatprep.subr.mxu0 0.0
    %1686 = vmatpush1.msra.mxu0 0.0
    %1687 = vmatprep.subr.mxu0 0.0
    %1688 = vmatpush1.msra.mxu0 0.0
    %1689 = vmatprep.subr.mxu0 0.0
    %1690 = vmatpush1.msra.mxu0 0.0
    %1691 = vmatprep.subr.mxu0 0.0
    %1692 = vmatpush1.msra.mxu0 0.0
    %1693 = vmatprep.subr.mxu0 0.0
    %1694 = vmatpush1.msra.mxu0 0.0
    %1695 = vmatprep.subr.mxu0 0.0
    %1696 = vmatpush1.msra.mxu0 0.0
    %1697 = vmatprep.subr.mxu0 0.0
    %1698 = vmatpush1.msra.mxu0 0.0
    %1699 = vmatprep.subr.mxu0 0.0
    %1700 = vmatpush1.msra.mxu0 0.0
    %1701 = vmatprep.subr.mxu0 0.0
    %1702 = vmatpush1.msra.mxu0 %v1666
    %1703 = vmatprep.subr.mxu0 0.0
    %1704 = vmatpush2.msra.mxu0 0.0
    %1705 = vmatprep.subr.mxu0 0.0
    %1706 = vmatpush2.msra.mxu0 0.0
    %1707 = vmatprep.subr.mxu0 0.0
    %1708 = vmatpush2.msra.mxu0 0.0
    %1709 = vmatprep.subr.mxu0 0.0
    %1710 = vmatpush2.msra.mxu0 0.0
    %1711 = vmatprep.subr.mxu0 0.0
    %1712 = vmatpush2.msra.mxu0 0.0
    %1713 = vmatprep.subr.mxu0 0.0
    %1714 = vmatpush2.msra.mxu0 0.0
    %1715 = vmatprep.subr.mxu0 0.0
    %1716 = vmatpush2.msra.mxu0 0.0
    %1717 = vmatprep.subr.mxu0 0.0
    %1718 = vmatpush2.msra.mxu0 0.0
    %1719 = vmatprep.subr.mxu0 0.0
    %1720 = vmatpush2.msra.mxu0 0.0
    %1721 = vmatprep.subr.mxu0 0.0
    %1722 = vmatpush2.msra.mxu0 0.0
    %1723 = vmatprep.subr.mxu0 0.0
    %1724 = vmatpush2.msra.mxu0 0.0
    %1725 = vmatprep.subr.mxu0 0.0
    %1726 = vmatpush2.msra.mxu0 0.0
    %1727 = vmatprep.subr.mxu0 0.0
    %1728 = vmatpush2.msra.mxu0 0.0
    %1729 = vmatprep.subr.mxu0 0.0
    %1730 = vmatpush2.msra.mxu0 0.0
    %1731 = vmatprep.subr.mxu0 0.0
    %1732 = vmatpush2.msra.mxu0 0.0
    %1733 = vmatprep.subr.mxu0 0.0
    %1734 = vmatpush2.msra.mxu0 0.0
    %1735 = vmatprep.mubr.f32.mxu0 0.0
    %1736 = vmatmul.mubr.f32.gmra.mxu0 %v1669
    %v1737 = vpop.f32.mrf.mxu0
    %v1738 = vadd.f32 0.0, %v1737
    %v1739 = vpop.f32.mrf.mxu0
    %1740 = vdwg.mxu0
    %v1742 = vsel %vm172, %v1662, 0
    %v1745 = vsel %vm172, %v1738, 0
    %1747 = vmatprep.subr.mxu0 0.0
    %1748 = vmatpush1.msra.mxu0 0.0
    %1749 = vmatprep.subr.mxu0 0.0
    %1750 = vmatpush1.msra.mxu0 0.0
    %1751 = vmatprep.subr.mxu0 0.0
    %1752 = vmatpush1.msra.mxu0 0.0
    %1753 = vmatprep.subr.mxu0 0.0
    %1754 = vmatpush1.msra.mxu0 0.0
    %1755 = vmatprep.subr.mxu0 0.0
    %1756 = vmatpush1.msra.mxu0 0.0
    %1757 = vmatprep.subr.mxu0 0.0
    %1758 = vmatpush1.msra.mxu0 0.0
    %1759 = vmatprep.subr.mxu0 0.0
    %1760 = vmatpush1.msra.mxu0 0.0
    %1761 = vmatprep.subr.mxu0 0.0
    %1762 = vmatpush1.msra.mxu0 0.0
    %1763 = vmatprep.subr.mxu0 0.0
    %1764 = vmatpush1.msra.mxu0 0.0
    %1765 = vmatprep.subr.mxu0 0.0
    %1766 = vmatpush1.msra.mxu0 0.0
    %1767 = vmatprep.subr.mxu0 0.0
    %1768 = vmatpush1.msra.mxu0 0.0
    %1769 = vmatprep.subr.mxu0 0.0
    %1770 = vmatpush1.msra.mxu0 0.0
    %1771 = vmatprep.subr.mxu0 0.0
    %1772 = vmatpush1.msra.mxu0 0.0
    %1773 = vmatprep.subr.mxu0 0.0
    %1774 = vmatpush1.msra.mxu0 0.0
    %1775 = vmatprep.subr.mxu0 0.0
    %1776 = vmatpush1.msra.mxu0 0.0
    %1777 = vmatprep.subr.mxu0 0.0
    %1778 = vmatpush1.msra.mxu0 %v168
    %1779 = vmatprep.subr.mxu0 0.0
    %1780 = vmatpush2.msra.mxu0 0.0
    %1781 = vmatprep.subr.mxu0 0.0
    %1782 = vmatpush2.msra.mxu0 0.0
    %1783 = vmatprep.subr.mxu0 0.0
    %1784 = vmatpush2.msra.mxu0 0.0
    %1785 = vmatprep.subr.mxu0 0.0
    %1786 = vmatpush2.msra.mxu0 0.0
    %1787 = vmatprep.subr.mxu0 0.0
    %1788 = vmatpush2.msra.mxu0 0.0
    %1789 = vmatprep.subr.mxu0 0.0
    %1790 = vmatpush2.msra.mxu0 0.0
    %1791 = vmatprep.subr.mxu0 0.0
    %1792 = vmatpush2.msra.mxu0 0.0
    %1793 = vmatprep.subr.mxu0 0.0
    %1794 = vmatpush2.msra.mxu0 0.0
    %1795 = vmatprep.subr.mxu0 0.0
    %1796 = vmatpush2.msra.mxu0 0.0
    %1797 = vmatprep.subr.mxu0 0.0
    %1798 = vmatpush2.msra.mxu0 0.0
    %1799 = vmatprep.subr.mxu0 0.0
    %1800 = vmatpush2.msra.mxu0 0.0
    %1801 = vmatprep.subr.mxu0 0.0
    %1802 = vmatpush2.msra.mxu0 0.0
    %1803 = vmatprep.subr.mxu0 0.0
    %1804 = vmatpush2.msra.mxu0 0.0
    %1805 = vmatprep.subr.mxu0 0.0
    %1806 = vmatpush2.msra.mxu0 0.0
    %1807 = vmatprep.subr.mxu0 0.0
    %1808 = vmatpush2.msra.mxu0 0.0
    %1809 = vmatprep.subr.mxu0 0.0
    %1810 = vmatpush2.msra.mxu0 0.0
    %1811 = vmatprep.mubr.f32.mxu0 0.0
    %1812 = vmatmul.mubr.f32.gmra.mxu0 %v1742
    %v1813 = vpop.f32.mrf.mxu0
    %v1814 = vadd.f32 0.0, %v1813
    %v1815 = vpop.f32.mrf.mxu0
    %1816 = vmatprep.mubr.f32.mxu0 0.0
    %1817 = vmatmul.mubr.f32.gmra.mxu0 %v1745
    %v1818 = vpop.f32.mrf.mxu0
    %v1819 = vadd.f32 0.0, %v1818
    %v1820 = vpop.f32.mrf.mxu0
    %1821 = vdwg.mxu0
    %v1822 = vadd.f32 %v1407, %v1814
    %v1823 = vadd.f32 %v1408, %v1819
    %v1824 = vld [vmem:[%s4] sm:$0x1]
    %v1826 = vlaneseq
    %v1827 = vshrl.u32 %v1826, 7
    %v1828 = vsub.s32 0, %v1827
    %v1829 = vrot.slane %v1824, %v1828
    %v1831 = vadd.f32 %v1822, %v1829
    %v1832 = vadd.f32 %v1823, %v1829
    %vm1833 = vcmask 261120
    %1834 = vst.msk [vmem:[#allocation8] sm:$0xff] %vm1833, %v1831
    %1835 = vst.msk [vmem:[#allocation8 + $0x8] sm:$0xff] %vm1833, %v1832
    // Predicated region
    $region34: #{tpu_custom_call.1} parent=1 // pred_check
      _
    $region35: #{tpu_custom_call.1} parent=1 // pred_check_branch
      %1837 = sbr.rel (0) target = $region37
    $region36: #{tpu_custom_call.1} parent=1 // pred_region
      %s1839 = ssub.s32 256, 256
      %1840 = vsyncadd [#allocation4], %s1839
      %s1841 = sshll.u32 [#allocation8], 4
      %s1842 = int_to_ptr.vmem [resolvable:$true] %s1841
      %1847 = dma.vmem_to_hbm [thread:$0]  %s1842, 256, %s5, [#allocation4], 128, 128, 8
    $region37: #{tpu_custom_call.1} parent=1 // pred_fallthru
      _
    // Predicated region
    $region38: #{tpu_custom_call.1} parent=1 // pred_check
      _
    $region39: #{tpu_custom_call.1} parent=1 // pred_check_branch
      %1849 = sbr.rel (0) target = $region41
    $region40: #{tpu_custom_call.1} parent=1 // pred_region
      %1850 = dma.done [#allocation4], 256
    $region41: #{tpu_custom_call.1} parent=1 // pred_fallthru
      _
    %1851 = vsyncpa [#allocation3], 1
    %1852 = vsyncpa [#allocation6], 1
    %1853 = vsyncpa [#allocation4], 1

</llo_original>
